<compile_context>
chip_gen: v5e
topology: v5e:2x2
jax: 0.10.0
libtpu: 0.0.40
codegen_flags: <defaults>
</compile_context>

<pallas_src>
import functools

import jax
import jax.numpy as jnp
from jax.experimental import pallas as pl
from jax.experimental.pallas import tpu as pltpu

EPS = 1e-5

_WEIGHT_ORDER = ('wqkv3', 'bqkv3', 'wo3', 'bo', 'g1', 'be1',
                 'w1', 'b1', 'w2', 'b2', 'g2', 'be2')


def _layernorm(x, gamma, beta):
    mu = jnp.mean(x, axis=-1, keepdims=True)
    var = jnp.mean((x - mu) ** 2, axis=-1, keepdims=True)
    return (x - mu) * jax.lax.rsqrt(var + EPS) * gamma + beta


def transformer_block_kernel(*refs, num_heads, seq_len, batch, fused_qkv,
                             compute_dtype):
    """One fused transformer block over a (batch*seq_len, E) row block.

    Ref order (fused self-attention):
        q, wqkv3, bqkv3, wo3, bo, g1, be1, w1, b1, w2, b2, g2, be2, out
    Ref order (cross-attention): q, k, v, <same weights>, out
    """
    if fused_qkv:
        (q_ref, wqkv_ref, bqkv_ref, wo_ref, bo_ref, g1_ref, be1_ref,
         w1_ref, b1_ref, w2_ref, b2_ref, g2_ref, be2_ref, out_ref) = refs
        k_ref = v_ref = q_ref
    else:
        (q_ref, k_ref, v_ref, wqkv_ref, bqkv_ref, wo_ref, bo_ref, g1_ref,
         be1_ref, w1_ref, b1_ref, w2_ref, b2_ref, g2_ref, be2_ref,
         out_ref) = refs

    E = out_ref.shape[-1]
    H, B, L = num_heads, batch, seq_len
    hd = E // H
    R = B * L
    cd = compute_dtype

    q_in = q_ref[...]                       # (R, E) f32 residual stream
    q_c = q_in.astype(cd)                   # MXU operand (bf16 in fast mode)
    if fused_qkv:
        k_c = v_c = q_c
    else:
        k_c = k_ref[...].astype(cd)
        v_c = v_ref[...].astype(cd)

    # Head concat is folded into the output projection via this accumulator:
    # no lane-axis slicing or concatenation anywhere in the kernel.
    acc = jnp.zeros((R, E), jnp.float32)

    # TODO(synk): flash-style key tiling for long L (see header).
    for h in range(H):
        # Per-head projections.  Weights are pre-stacked (3H, E, hd): per-head
        # access is a leading-axis ref index, never a lane slice.  The
        # 1/sqrt(hd) softmax scale is already folded into the q weights/bias.
        q_h = jnp.dot(q_c, wqkv_ref[h],
                      preferred_element_type=jnp.float32) + bqkv_ref[h]
        k_h = jnp.dot(k_c, wqkv_ref[H + h],
                      preferred_element_type=jnp.float32) + bqkv_ref[H + h]
        v_h = jnp.dot(v_c, wqkv_ref[2 * H + h],
                      preferred_element_type=jnp.float32) + bqkv_ref[2 * H + h]

        # (R, hd) -> (B, L, hd): leading/sublane split only (layout friendly).
        q_b = q_h.astype(cd).reshape(B, L, hd)
        k_b = k_h.astype(cd).reshape(B, L, hd)
        v_b = v_h.astype(cd).reshape(B, L, hd)

        s = jnp.einsum('bqd,bkd->bqk', q_b, k_b,
                       preferred_element_type=jnp.float32)       # (B, L, L) f32
        s = s - jnp.max(s, axis=-1, keepdims=True)
        p = jnp.exp(s)
        denom = jnp.sum(p, axis=-1, keepdims=True)
        # EUP approximate reciprocal + one Newton step -> f32-accurate softmax
        # normalization without a VPU divide.
        inv = pl.reciprocal(denom, approx=True)
        inv = inv * (2.0 - denom * inv)
        p = p * inv

        ctx = jnp.einsum('bqk,bkd->bqd', p.astype(cd), v_b,
                         preferred_element_type=jnp.float32)     # (B, L, hd)

        # Fold the head concat into the output projection: accumulate
        # ctx_h @ Wo_h  (Wo pre-stacked (H, hd, E) -> leading-axis index).
        acc = acc + jnp.dot(ctx.reshape(R, hd).astype(cd), wo_ref[h],
                            preferred_element_type=jnp.float32)

    attn_out = acc + bo_ref[...]

    # residual + LayerNorm 1 (dropout = identity, eval mode)
    x = _layernorm(attn_out + q_in, g1_ref[...], be1_ref[...])

    # feed-forward: Linear -> ReLU -> Linear (f32 accumulation)
    h1 = jnp.dot(x.astype(cd), w1_ref[...],
                 preferred_element_type=jnp.float32) + b1_ref[...]
    h1 = jnp.maximum(h1, 0.0)
    ff = jnp.dot(h1.astype(cd), w2_ref[...],
                 preferred_element_type=jnp.float32) + b2_ref[...]

    # residual + LayerNorm 2
    out_ref[...] = _layernorm(ff + x, g2_ref[...], be2_ref[...])


def prepare_params(params, *, heads, compute_dtype=jnp.float32):
    """One-time weight preparation (do NOT call per forward pass).

    Transposes, per-head stacking, scale folding and dtype casts are done here
    once so the per-call wrapper emits no XLA transposes of big weights.
    Matmul weights are stored in `compute_dtype` (bf16 recommended on TPU);
    biases / LayerNorm params stay f32 (applied to f32 accumulators).
    """
    E = params['out_proj_weight'].shape[0]
    hd = E // heads
    scale = 1.0 / float(hd) ** 0.5
    cd = compute_dtype

    wq, wk, wv = jnp.split(params['in_proj_weight'].astype(jnp.float32), 3, axis=0)
    bq, bk, bv = jnp.split(params['in_proj_bias'].astype(jnp.float32), 3)
    wq, bq = wq * scale, bq * scale          # fold 1/sqrt(hd) into q projection

    def head_stack(w):                       # (E_out, E_in) -> (H, E_in, hd)
        return jnp.transpose(w.T.reshape(E, heads, hd), (1, 0, 2))

    wqkv3 = jnp.concatenate(
        [head_stack(wq), head_stack(wk), head_stack(wv)], axis=0)   # (3H, E, hd)
    bqkv3 = jnp.concatenate([bq, bk, bv]).reshape(3 * heads, 1, hd)  # (3H, 1, hd)
    wo3 = params['out_proj_weight'].astype(jnp.float32).T.reshape(heads, hd, E)

    return {
        'wqkv3': wqkv3.astype(cd),
        'bqkv3': bqkv3,
        'wo3': wo3.astype(cd),
        'bo': params['out_proj_bias'].reshape(1, E).astype(jnp.float32),
        'g1': params['norm1_weight'].reshape(1, E).astype(jnp.float32),
        'be1': params['norm1_bias'].reshape(1, E).astype(jnp.float32),
        'w1': params['ff1_weight'].astype(jnp.float32).T.astype(cd),   # (E, hidden)
        'b1': params['ff1_bias'].reshape(1, -1).astype(jnp.float32),
        'w2': params['ff2_weight'].astype(jnp.float32).T.astype(cd),   # (hidden, E)
        'b2': params['ff2_bias'].reshape(1, E).astype(jnp.float32),
        'g2': params['norm2_weight'].reshape(1, E).astype(jnp.float32),
        'be2': params['norm2_bias'].reshape(1, E).astype(jnp.float32),
    }


def _auto_batch_block(N, L):
    """Batches handled per grid step.

    Prefers an even number of grid blocks (dimension_semantics=("parallel",)
    then shards across both v7x TensorCores) while keeping every block 8-row
    aligned, >= 64 rows of real work, and small enough to be VMEM friendly.
    """
    rows = N * L
    if N < 2 or rows < 128:
        return N                       # tiny: grid steps are pure overhead
    divisors = [d for d in range(1, N) if N % d == 0]
    aligned = [d for d in divisors if (d * L) % 8 == 0]
    if not aligned:
        return N
    even = [d for d in aligned if (N // d) % 2 == 0]
    pool = even if even else (aligned if rows >= 1024 else [])
    if not pool:
        return N
    good = [d for d in pool if 64 <= d * L <= 2048]
    if good:
        return max(good)
    small = [d for d in pool if d * L <= 2048]
    return max(small) if small else min(pool)


@functools.cache
def _weight_pipeline_mode():
    """Probe pipeline_mode=pl.Buffered(1) support once.

    Grid-invariant weights only need a single VMEM buffer; single-buffering
    them halves the resident weight footprint (biggest win on v7x's 64 MiB and
    v5e's 16 MiB scoped default).  Falls back to default double-buffering if
    the installed backend rejects it.
    """
    if not hasattr(pl, 'Buffered'):
        return None
    try:
        mode = pl.Buffered(1)

        def _copy(x_ref, o_ref):
            o_ref[...] = x_ref[...]

        fn = pl.pallas_call(
            _copy,
            out_shape=jax.ShapeDtypeStruct((8, 128), jnp.float32),
            grid=(2,),
            in_specs=[pl.BlockSpec((8, 128), lambda i: (0, 0),
                                   pipeline_mode=mode)],
            out_specs=pl.BlockSpec((8, 128), lambda i: (0, 0)),
        )
        jax.block_until_ready(fn(jnp.zeros((8, 128), jnp.float32)))
        return mode
    except Exception:
        return None


def _const_spec(shape, mode):
    """BlockSpec for a grid-invariant (whole-array) operand."""
    index_map = lambda i: (0,) * len(shape)
    if mode is not None:
        return pl.BlockSpec(shape, index_map, pipeline_mode=mode)
    return pl.BlockSpec(shape, index_map)


def _vmem_limit_bytes(rows_blk, seq_len, E, hidden, heads, n_act_inputs,
                      weight_bytes, single_buffered_weights):
    """Explicit scoped-VMEM budget (v7x has only 64 MiB physical VMEM)."""
    hd = E // heads
    act = (n_act_inputs + 1) * rows_blk * E * 4 * 2       # in/out, double buffered
    wts = weight_bytes * (1 if single_buffered_weights else 2)
    inter = rows_blk * (3 * E + 3 * hd + hidden + seq_len) * 4
    est = int((act + wts + inter) * 1.5) + (4 << 20)      # headroom
    return min(max(est, 16 << 20), 48 << 20)


def transformer_block(value, key_, query, prep, *, heads, batch_block=None,
                      self_attention=None):
    """value / key_ / query: (L, N, E) float32 (nn.MultiheadAttention layout).

    `prep` comes from prepare_params().  self_attention=True forces the fused
    q=k=v path; by default it is inferred from object identity.
    """
    L, N, E = query.shape
    hidden = prep['w1'].shape[1]
    compute_dtype = prep['wqkv3'].dtype
    if self_attention is None:
        fused = (query is key_) and (key_ is value)
    else:
        fused = bool(self_attention)

    def to2d(x):  # (L, N, E) -> (N*L, E), batch-major contiguous rows
        return jnp.transpose(x, (1, 0, 2)).reshape(N * L, E)

    q2 = to2d(query)

    if batch_block is None:
        batch_block = _auto_batch_block(N, L)
    if N % batch_block != 0 or (batch_block != N and (batch_block * L) % 8 != 0):
        batch_block = N
    num_blocks = N // batch_block
    rows_blk = batch_block * L

    row_spec = pl.BlockSpec((rows_blk, E), lambda i: (i, 0))
    mode = _weight_pipeline_mode()

    weights = tuple(prep[k] for k in _WEIGHT_ORDER)
    weight_bytes = sum(int(a.size) * a.dtype.itemsize for a in weights)
    weight_specs = [_const_spec(a.shape, mode) for a in weights]

    if fused:
        # Self-attention: DMA the activation row tile once, not three times.
        args = (q2,) + weights
        in_specs = [row_spec] + weight_specs
        n_act = 1
    else:
        args = (q2, to2d(key_), to2d(value)) + weights
        in_specs = [row_spec, row_spec, row_spec] + weight_specs
        n_act = 3

    kernel = functools.partial(
        transformer_block_kernel,
        num_heads=heads, seq_len=L, batch=batch_block,
        fused_qkv=fused, compute_dtype=compute_dtype)

    out2 = pl.pallas_call(
        kernel,
        out_shape=jax.ShapeDtypeStruct((N * L, E), jnp.float32),
        grid=(num_blocks,),
        in_specs=in_specs,
        out_specs=row_spec,
        compiler_params=pltpu.CompilerParams(
            dimension_semantics=("parallel",),
            vmem_limit_bytes=_vmem_limit_bytes(
                rows_blk, L, E, hidden, heads, n_act,
                weight_bytes, mode is not None)),
    )(*args)

    return jnp.transpose(out2.reshape(N, L, E), (1, 0, 2))


def reference(value, key_, query, params, heads):
    """Pure-JAX f32 replica of the PyTorch forward (dropout = identity)."""
    L, N, E = query.shape
    hd = E // heads
    wq, wk, wv = jnp.split(params['in_proj_weight'], 3, axis=0)
    bq, bk, bv = jnp.split(params['in_proj_bias'], 3)
    q = query @ wq.T + bq
    k = key_ @ wk.T + bk
    v = value @ wv.T + bv

    def split_heads(x):  # (L, N, E) -> (N, H, L, hd)
        return jnp.transpose(x.reshape(L, N, heads, hd), (1, 2, 0, 3))

    qh, kh, vh = split_heads(q), split_heads(k), split_heads(v)
    s = jnp.einsum('nhqd,nhkd->nhqk', qh, kh) / (float(hd) ** 0.5)
    p = jax.nn.softmax(s, axis=-1)
    ctx = jnp.einsum('nhqk,nhkd->nhqd', p, vh)
    ctx = jnp.transpose(ctx, (2, 0, 1, 3)).reshape(L, N, E)
    attn = ctx @ params['out_proj_weight'].T + params['out_proj_bias']

    def ln(x, g, b):
        mu = x.mean(-1, keepdims=True)
        var = ((x - mu) ** 2).mean(-1, keepdims=True)
        return (x - mu) / jnp.sqrt(var + EPS) * g + b

    x = ln(attn + query, params['norm1_weight'], params['norm1_bias'])
    h = jax.nn.relu(x @ params['ff1_weight'].T + params['ff1_bias'])
    ff = h @ params['ff2_weight'].T + params['ff2_bias']
    return ln(ff + x, params['norm2_weight'], params['norm2_bias'])


if __name__ == "__main__":
    # Small, forward-consistent shapes
    L, N, E = 8, 2, 32          # seq, batch, embed_size
    heads = 4
    forward_expansion = 4
    hidden = forward_expansion * E

    root = jax.random.PRNGKey(0)
    k_in, k_par = jax.random.split(root)
    kq, kk, kv = jax.random.split(k_in, 3)
    query = jax.random.normal(kq, (L, N, E), jnp.float32)
    key_ = jax.random.normal(kk, (L, N, E), jnp.float32)
    value = jax.random.normal(kv, (L, N, E), jnp.float32)

    pk = jax.random.split(k_par, 12)
    s = 0.05
    params = {
        'in_proj_weight': s * jax.random.normal(pk[0], (3 * E, E), jnp.float32),
        'in_proj_bias':   s * jax.random.normal(pk[1], (3 * E,), jnp.float32),
        'out_proj_weight': s * jax.random.normal(pk[2], (E, E), jnp.float32),
        'out_proj_bias':   s * jax.random.normal(pk[3], (E,), jnp.float32),
        'norm1_weight': 1.0 + s * jax.random.normal(pk[4], (E,), jnp.float32),
        'norm1_bias':   s * jax.random.normal(pk[5], (E,), jnp.float32),
        'norm2_weight': 1.0 + s * jax.random.normal(pk[6], (E,), jnp.float32),
        'norm2_bias':   s * jax.random.normal(pk[7], (E,), jnp.float32),
        'ff1_weight': s * jax.random.normal(pk[8], (hidden, E), jnp.float32),
        'ff1_bias':   s * jax.random.normal(pk[9], (hidden,), jnp.float32),
        'ff2_weight': s * jax.random.normal(pk[10], (E, hidden), jnp.float32),
        'ff2_bias':   s * jax.random.normal(pk[11], (E,), jnp.float32),
    }

    # One-time weight prep (f32-exact and bf16 MXU-fast variants).
    prep_f32 = prepare_params(params, heads=heads, compute_dtype=jnp.float32)
    prep_bf16 = prepare_params(params, heads=heads, compute_dtype=jnp.bfloat16)

    # --- test 1: cross-attention (distinct q/k/v), f32, single grid block ---
    out = transformer_block(value, key_, query, prep_f32, heads=heads)
    out = jax.block_until_ready(out)
    ref = reference(value, key_, query, params, heads)
    assert out.shape == (L, N, E), out.shape
    assert jnp.allclose(out, ref, atol=1e-4, rtol=1e-4), \
        float(jnp.max(jnp.abs(out - ref)))

    # --- test 2: self-attention (fused single-input path), f32,
    #             batch-parallel grid (v7x megacore sharding) ---
    N2 = 8
    x2 = jax.random.normal(jax.random.PRNGKey(1), (L, N2, E), jnp.float32)
    out2 = jax.block_until_ready(
        transformer_block(x2, x2, x2, prep_f32, heads=heads, batch_block=2))
    ref2 = reference(x2, x2, x2, params, heads)
    assert out2.shape == (L, N2, E), out2.shape
    assert jnp.allclose(out2, ref2, atol=1e-4, rtol=1e-4), \
        float(jnp.max(jnp.abs(out2 - ref2)))

    # --- test 3: bf16 MXU operands with f32 accumulation (looser tolerance) ---
    out3 = jax.block_until_ready(
        transformer_block(x2, x2, x2, prep_bf16, heads=heads, batch_block=2))
    assert out3.shape == (L, N2, E), out3.shape
    assert jnp.allclose(out3, ref2, atol=3e-2, rtol=3e-2), \
        float(jnp.max(jnp.abs(out3 - ref2)))

    print("KERNEL_OK")
</pallas_src>

<mosaic_0001>
module attributes {stable_mosaic.version = 11 : i64} {
  func.func @_copy(%arg0: i32, %arg1: memref<8x128xf32, #tpu.memory_space<vmem>>, %arg2: memref<8x128xf32, #tpu.memory_space<vmem>>) attributes {dimension_semantics = [#tpu.dimension_semantics<arbitrary>], iteration_bounds = array<i64: 2>, scalar_prefetch = 0 : i64, scratch_operands = 0 : i64, tpu.core_type = #tpu.core_type<tc>, window_params = [{pipeline_mode = #tpu.pipeline_mode<synchronous>, transform_indices = @transform_0, window_bounds = array<i64: 8, 128>}, {pipeline_mode = #tpu.pipeline_mode<synchronous>, transform_indices = @transform_1, window_bounds = array<i64: 8, 128>}]} {
    %c0 = arith.constant 0 : index
    %c0_0 = arith.constant 0 : index
    %0 = vector.load %arg1[%c0, %c0_0] : memref<8x128xf32, #tpu.memory_space<vmem>>, vector<8x128xf32>
    %c0_1 = arith.constant 0 : index
    %c0_2 = arith.constant 0 : index
    %1 = vector.load %arg2[%c0_1, %c0_2] : memref<8x128xf32, #tpu.memory_space<vmem>>, vector<8x128xf32>
    tpu.vector_store %arg2[%c0_1, %c0_2], %0 {strides = array<i32>} : memref<8x128xf32, #tpu.memory_space<vmem>>, vector<8x128xf32>,
    return
  }
  func.func @transform_0(%arg0: i32) -> (i32, i32) {
    %c0_i32 = arith.constant 0 : i32
    %c0_i32_0 = arith.constant 0 : i32
    %c0_i32_1 = arith.constant 0 : i32
    return %c0_i32, %c0_i32_0 : i32, i32
  }
  func.func @transform_1(%arg0: i32) -> (i32, i32) {
    %c0_i32 = arith.constant 0 : i32
    %c0_i32_0 = arith.constant 0 : i32
    %c0_i32_1 = arith.constant 0 : i32
    return %c0_i32, %c0_i32_0 : i32, i32
  }
}

module attributes {stable_mosaic.version = 11 : i64} {
  func.func @transformer_block_kernel(%arg0: i32, %arg1: memref<16x32xf32, #tpu.memory_space<vmem>>, %arg2: memref<16x32xf32, #tpu.memory_space<vmem>>, %arg3: memref<16x32xf32, #tpu.memory_space<vmem>>, %arg4: memref<12x32x8xf32, #tpu.memory_space<vmem>>, %arg5: memref<12x1x8xf32, #tpu.memory_space<vmem>>, %arg6: memref<4x8x32xf32, #tpu.memory_space<vmem>>, %arg7: memref<1x32xf32, #tpu.memory_space<vmem>>, %arg8: memref<1x32xf32, #tpu.memory_space<vmem>>, %arg9: memref<1x32xf32, #tpu.memory_space<vmem>>, %arg10: memref<32x128xf32, #tpu.memory_space<vmem>>, %arg11: memref<1x128xf32, #tpu.memory_space<vmem>>, %arg12: memref<128x32xf32, #tpu.memory_space<vmem>>, %arg13: memref<1x32xf32, #tpu.memory_space<vmem>>, %arg14: memref<1x32xf32, #tpu.memory_space<vmem>>, %arg15: memref<1x32xf32, #tpu.memory_space<vmem>>, %arg16: memref<16x32xf32, #tpu.memory_space<vmem>>) attributes {dimension_semantics = [#tpu.dimension_semantics<parallel>], iteration_bounds = array<i64: 1>, scalar_prefetch = 0 : i64, scratch_operands = 0 : i64, tpu.core_type = #tpu.core_type<tc>, window_params = [{transform_indices = @transform_0, window_bounds = array<i64: 16, 32>}, {transform_indices = @transform_1, window_bounds = array<i64: 16, 32>}, {transform_indices = @transform_2, window_bounds = array<i64: 16, 32>}, {pipeline_mode = #tpu.pipeline_mode<synchronous>, transform_indices = @transform_3, window_bounds = array<i64: 12, 32, 8>}, {pipeline_mode = #tpu.pipeline_mode<synchronous>, transform_indices = @transform_4, window_bounds = array<i64: 12, 1, 8>}, {pipeline_mode = #tpu.pipeline_mode<synchronous>, transform_indices = @transform_5, window_bounds = array<i64: 4, 8, 32>}, {pipeline_mode = #tpu.pipeline_mode<synchronous>, transform_indices = @transform_6, window_bounds = array<i64: 1, 32>}, {pipeline_mode = #tpu.pipeline_mode<synchronous>, transform_indices = @transform_7, window_bounds = array<i64: 1, 32>}, {pipeline_mode = #tpu.pipeline_mode<synchronous>, transform_indices = @transform_8, window_bounds = array<i64: 1, 32>}, {pipeline_mode = #tpu.pipeline_mode<synchronous>, transform_indices = @transform_9, window_bounds = array<i64: 32, 128>}, {pipeline_mode = #tpu.pipeline_mode<synchronous>, transform_indices = @transform_10, window_bounds = array<i64: 1, 128>}, {pipeline_mode = #tpu.pipeline_mode<synchronous>, transform_indices = @transform_11, window_bounds = array<i64: 128, 32>}, {pipeline_mode = #tpu.pipeline_mode<synchronous>, transform_indices = @transform_12, window_bounds = array<i64: 1, 32>}, {pipeline_mode = #tpu.pipeline_mode<synchronous>, transform_indices = @transform_13, window_bounds = array<i64: 1, 32>}, {pipeline_mode = #tpu.pipeline_mode<synchronous>, transform_indices = @transform_14, window_bounds = array<i64: 1, 32>}, {transform_indices = @transform_15, window_bounds = array<i64: 16, 32>}]} {
    %c0 = arith.constant 0 : index
    %c0_0 = arith.constant 0 : index
    %0 = vector.load %arg1[%c0, %c0_0] : memref<16x32xf32, #tpu.memory_space<vmem>>, vector<16x32xf32>
    %c0_1 = arith.constant 0 : index
    %c0_2 = arith.constant 0 : index
    %1 = vector.load %arg2[%c0_1, %c0_2] : memref<16x32xf32, #tpu.memory_space<vmem>>, vector<16x32xf32>
    %c0_3 = arith.constant 0 : index
    %c0_4 = arith.constant 0 : index
    %2 = vector.load %arg3[%c0_3, %c0_4] : memref<16x32xf32, #tpu.memory_space<vmem>>, vector<16x32xf32>
    %cst = arith.constant 0.000000e+00 : f32
    %3 = vector.broadcast %cst : f32 to vector<16x32xf32>
    %c0_5 = arith.constant 0 : index
    %c0_6 = arith.constant 0 : index
    %c0_7 = arith.constant 0 : index
    %4 = vector.load %arg4[%c0_5, %c0_6, %c0_7] : memref<12x32x8xf32, #tpu.memory_space<vmem>>, vector<1x32x8xf32>
    %5 = vector.shape_cast %4 : vector<1x32x8xf32> to vector<32x8xf32>
    %cst_8 = arith.constant dense<0.000000e+00> : vector<16x8xf32>
    %6 = tpu.matmul %0, %5, %cst_8 {dimension_numbers = #tpu.dot_dimension_numbers<[1], [0], [0], [1], [0, 0, 1, 1], [], []>} : vector<16x32xf32>, vector<32x8xf32>, vector<16x8xf32> -> vector<16x8xf32>
    %c0_9 = arith.constant 0 : index
    %c0_10 = arith.constant 0 : index
    %c0_11 = arith.constant 0 : index
    %7 = vector.load %arg5[%c0_9, %c0_10, %c0_11] : memref<12x1x8xf32, #tpu.memory_space<vmem>>, vector<1x1x8xf32>
    %8 = vector.shape_cast %7 : vector<1x1x8xf32> to vector<1x8xf32>
    %9 = vector.broadcast %8 : vector<1x8xf32> to vector<16x8xf32>
    %10 = arith.addf %6, %9 : vector<16x8xf32>
    %c4 = arith.constant 4 : index
    %c0_12 = arith.constant 0 : index
    %c0_13 = arith.constant 0 : index
    %11 = vector.load %arg4[%c4, %c0_12, %c0_13] : memref<12x32x8xf32, #tpu.memory_space<vmem>>, vector<1x32x8xf32>
    %12 = vector.shape_cast %11 : vector<1x32x8xf32> to vector<32x8xf32>
    %cst_14 = arith.constant dense<0.000000e+00> : vector<16x8xf32>
    %13 = tpu.matmul %1, %12, %cst_14 {dimension_numbers = #tpu.dot_dimension_numbers<[1], [0], [0], [1], [0, 0, 1, 1], [], []>} : vector<16x32xf32>, vector<32x8xf32>, vector<16x8xf32> -> vector<16x8xf32>
    %c4_15 = arith.constant 4 : index
    %c0_16 = arith.constant 0 : index
    %c0_17 = arith.constant 0 : index
    %14 = vector.load %arg5[%c4_15, %c0_16, %c0_17] : memref<12x1x8xf32, #tpu.memory_space<vmem>>, vector<1x1x8xf32>
    %15 = vector.shape_cast %14 : vector<1x1x8xf32> to vector<1x8xf32>
    %16 = vector.broadcast %15 : vector<1x8xf32> to vector<16x8xf32>
    %17 = arith.addf %13, %16 : vector<16x8xf32>
    %c8 = arith.constant 8 : index
    %c0_18 = arith.constant 0 : index
    %c0_19 = arith.constant 0 : index
    %18 = vector.load %arg4[%c8, %c0_18, %c0_19] : memref<12x32x8xf32, #tpu.memory_space<vmem>>, vector<1x32x8xf32>
    %19 = vector.shape_cast %18 : vector<1x32x8xf32> to vector<32x8xf32>
    %cst_20 = arith.constant dense<0.000000e+00> : vector<16x8xf32>
    %20 = tpu.matmul %2, %19, %cst_20 {dimension_numbers = #tpu.dot_dimension_numbers<[1], [0], [0], [1], [0, 0, 1, 1], [], []>} : vector<16x32xf32>, vector<32x8xf32>, vector<16x8xf32> -> vector<16x8xf32>
    %c8_21 = arith.constant 8 : index
    %c0_22 = arith.constant 0 : index
    %c0_23 = arith.constant 0 : index
    %21 = vector.load %arg5[%c8_21, %c0_22, %c0_23] : memref<12x1x8xf32, #tpu.memory_space<vmem>>, vector<1x1x8xf32>
    %22 = vector.shape_cast %21 : vector<1x1x8xf32> to vector<1x8xf32>
    %23 = vector.broadcast %22 : vector<1x8xf32> to vector<16x8xf32>
    %24 = arith.addf %20, %23 : vector<16x8xf32>
    %25 = vector.shape_cast %10 : vector<16x8xf32> to vector<2x8x8xf32>
    %26 = vector.shape_cast %17 : vector<16x8xf32> to vector<2x8x8xf32>
    %27 = vector.shape_cast %24 : vector<16x8xf32> to vector<2x8x8xf32>
    "tpu.trace_start"() <{level = 10 : i32, message = "bqd,bkd->bqk"}> : () -> ()
    %cst_24 = arith.constant dense<0.000000e+00> : vector<2x8x8xf32>
    %28 = tpu.matmul %25, %26, %cst_24 {dimension_numbers = #tpu.dot_dimension_numbers<[2], [2], [1], [1], [0, 0, 0, 1, 1, 1], [0], [0]>} : vector<2x8x8xf32>, vector<2x8x8xf32>, vector<2x8x8xf32> -> vector<2x8x8xf32>
    "tpu.trace_stop"() : () -> ()
    %cst_25 = arith.constant dense<0xFF800000> : vector<2x8xf32>
    %29 = vector.multi_reduction <maximumf>, %28, %cst_25 [2] : vector<2x8x8xf32> to vector<2x8xf32>
    %30 = vector.shape_cast %29 : vector<2x8xf32> to vector<2x8x1xf32>
    %31 = vector.broadcast %30 : vector<2x8x1xf32> to vector<2x8x8xf32>
    %32 = arith.subf %28, %31 : vector<2x8x8xf32>
    %33 = math.exp %32 : vector<2x8x8xf32>
    %cst_26 = arith.constant dense<0.000000e+00> : vector<2x8xf32>
    %34 = vector.multi_reduction <add>, %33, %cst_26 [2] : vector<2x8x8xf32> to vector<2x8xf32>
    %35 = vector.shape_cast %34 : vector<2x8xf32> to vector<2x8x1xf32>
    %36 = tpu.reciprocal %35 {approx = true} : vector<2x8x1xf32> -> vector<2x8x1xf32>
    %37 = arith.mulf %35, %36 : vector<2x8x1xf32>
    %cst_27 = arith.constant 2.000000e+00 : f32
    %38 = vector.broadcast %cst_27 : f32 to vector<2x8x1xf32>
    %39 = arith.subf %38, %37 : vector<2x8x1xf32>
    %40 = arith.mulf %36, %39 : vector<2x8x1xf32>
    %41 = vector.broadcast %40 : vector<2x8x1xf32> to vector<2x8x8xf32>
    %42 = arith.mulf %33, %41 : vector<2x8x8xf32>
    "tpu.trace_start"() <{level = 10 : i32, message = "bqk,bkd->bqd"}> : () -> ()
    %cst_28 = arith.constant dense<0.000000e+00> : vector<2x8x8xf32>
    %43 = tpu.matmul %42, %27, %cst_28 {dimension_numbers = #tpu.dot_dimension_numbers<[2], [1], [1], [2], [0, 0, 0, 1, 1, 2], [0], [0]>} : vector<2x8x8xf32>, vector<2x8x8xf32>, vector<2x8x8xf32> -> vector<2x8x8xf32>
    "tpu.trace_stop"() : () -> ()
    %44 = vector.shape_cast %43 : vector<2x8x8xf32> to vector<16x8xf32>
    %c0_29 = arith.constant 0 : index
    %c0_30 = arith.constant 0 : index
    %c0_31 = arith.constant 0 : index
    %45 = vector.load %arg6[%c0_29, %c0_30, %c0_31] : memref<4x8x32xf32, #tpu.memory_space<vmem>>, vector<1x8x32xf32>
    %46 = vector.shape_cast %45 : vector<1x8x32xf32> to vector<8x32xf32>
    %cst_32 = arith.constant dense<0.000000e+00> : vector<16x32xf32>
    %47 = tpu.matmul %44, %46, %cst_32 {dimension_numbers = #tpu.dot_dimension_numbers<[1], [0], [0], [1], [0, 0, 1, 1], [], []>} : vector<16x8xf32>, vector<8x32xf32>, vector<16x32xf32> -> vector<16x32xf32>
    %48 = arith.addf %3, %47 : vector<16x32xf32>
    %c1 = arith.constant 1 : index
    %c0_33 = arith.constant 0 : index
    %c0_34 = arith.constant 0 : index
    %49 = vector.load %arg4[%c1, %c0_33, %c0_34] : memref<12x32x8xf32, #tpu.memory_space<vmem>>, vector<1x32x8xf32>
    %50 = vector.shape_cast %49 : vector<1x32x8xf32> to vector<32x8xf32>
    %cst_35 = arith.constant dense<0.000000e+00> : vector<16x8xf32>
    %51 = tpu.matmul %0, %50, %cst_35 {dimension_numbers = #tpu.dot_dimension_numbers<[1], [0], [0], [1], [0, 0, 1, 1], [], []>} : vector<16x32xf32>, vector<32x8xf32>, vector<16x8xf32> -> vector<16x8xf32>
    %c1_36 = arith.constant 1 : index
    %c0_37 = arith.constant 0 : index
    %c0_38 = arith.constant 0 : index
    %52 = vector.load %arg5[%c1_36, %c0_37, %c0_38] : memref<12x1x8xf32, #tpu.memory_space<vmem>>, vector<1x1x8xf32>
    %53 = vector.shape_cast %52 : vector<1x1x8xf32> to vector<1x8xf32>
    %54 = vector.broadcast %53 : vector<1x8xf32> to vector<16x8xf32>
    %55 = arith.addf %51, %54 : vector<16x8xf32>
    %c5 = arith.constant 5 : index
    %c0_39 = arith.constant 0 : index
    %c0_40 = arith.constant 0 : index
    %56 = vector.load %arg4[%c5, %c0_39, %c0_40] : memref<12x32x8xf32, #tpu.memory_space<vmem>>, vector<1x32x8xf32>
    %57 = vector.shape_cast %56 : vector<1x32x8xf32> to vector<32x8xf32>
    %cst_41 = arith.constant dense<0.000000e+00> : vector<16x8xf32>
    %58 = tpu.matmul %1, %57, %cst_41 {dimension_numbers = #tpu.dot_dimension_numbers<[1], [0], [0], [1], [0, 0, 1, 1], [], []>} : vector<16x32xf32>, vector<32x8xf32>, vector<16x8xf32> -> vector<16x8xf32>
    %c5_42 = arith.constant 5 : index
    %c0_43 = arith.constant 0 : index
    %c0_44 = arith.constant 0 : index
    %59 = vector.load %arg5[%c5_42, %c0_43, %c0_44] : memref<12x1x8xf32, #tpu.memory_space<vmem>>, vector<1x1x8xf32>
    %60 = vector.shape_cast %59 : vector<1x1x8xf32> to vector<1x8xf32>
    %61 = vector.broadcast %60 : vector<1x8xf32> to vector<16x8xf32>
    %62 = arith.addf %58, %61 : vector<16x8xf32>
    %c9 = arith.constant 9 : index
    %c0_45 = arith.constant 0 : index
    %c0_46 = arith.constant 0 : index
    %63 = vector.load %arg4[%c9, %c0_45, %c0_46] : memref<12x32x8xf32, #tpu.memory_space<vmem>>, vector<1x32x8xf32>
    %64 = vector.shape_cast %63 : vector<1x32x8xf32> to vector<32x8xf32>
    %cst_47 = arith.constant dense<0.000000e+00> : vector<16x8xf32>
    %65 = tpu.matmul %2, %64, %cst_47 {dimension_numbers = #tpu.dot_dimension_numbers<[1], [0], [0], [1], [0, 0, 1, 1], [], []>} : vector<16x32xf32>, vector<32x8xf32>, vector<16x8xf32> -> vector<16x8xf32>
    %c9_48 = arith.constant 9 : index
    %c0_49 = arith.constant 0 : index
    %c0_50 = arith.constant 0 : index
    %66 = vector.load %arg5[%c9_48, %c0_49, %c0_50] : memref<12x1x8xf32, #tpu.memory_space<vmem>>, vector<1x1x8xf32>
    %67 = vector.shape_cast %66 : vector<1x1x8xf32> to vector<1x8xf32>
    %68 = vector.broadcast %67 : vector<1x8xf32> to vector<16x8xf32>
    %69 = arith.addf %65, %68 : vector<16x8xf32>
    %70 = vector.shape_cast %55 : vector<16x8xf32> to vector<2x8x8xf32>
    %71 = vector.shape_cast %62 : vector<16x8xf32> to vector<2x8x8xf32>
    %72 = vector.shape_cast %69 : vector<16x8xf32> to vector<2x8x8xf32>
    "tpu.trace_start"() <{level = 10 : i32, message = "bqd,bkd->bqk"}> : () -> ()
    %cst_51 = arith.constant dense<0.000000e+00> : vector<2x8x8xf32>
    %73 = tpu.matmul %70, %71, %cst_51 {dimension_numbers = #tpu.dot_dimension_numbers<[2], [2], [1], [1], [0, 0, 0, 1, 1, 1], [0], [0]>} : vector<2x8x8xf32>, vector<2x8x8xf32>, vector<2x8x8xf32> -> vector<2x8x8xf32>
    "tpu.trace_stop"() : () -> ()
    %cst_52 = arith.constant dense<0xFF800000> : vector<2x8xf32>
    %74 = vector.multi_reduction <maximumf>, %73, %cst_52 [2] : vector<2x8x8xf32> to vector<2x8xf32>
    %75 = vector.shape_cast %74 : vector<2x8xf32> to vector<2x8x1xf32>
    %76 = vector.broadcast %75 : vector<2x8x1xf32> to vector<2x8x8xf32>
    %77 = arith.subf %73, %76 : vector<2x8x8xf32>
    %78 = math.exp %77 : vector<2x8x8xf32>
    %cst_53 = arith.constant dense<0.000000e+00> : vector<2x8xf32>
    %79 = vector.multi_reduction <add>, %78, %cst_53 [2] : vector<2x8x8xf32> to vector<2x8xf32>
    %80 = vector.shape_cast %79 : vector<2x8xf32> to vector<2x8x1xf32>
    %81 = tpu.reciprocal %80 {approx = true} : vector<2x8x1xf32> -> vector<2x8x1xf32>
    %82 = arith.mulf %80, %81 : vector<2x8x1xf32>
    %cst_54 = arith.constant 2.000000e+00 : f32
    %83 = vector.broadcast %cst_54 : f32 to vector<2x8x1xf32>
    %84 = arith.subf %83, %82 : vector<2x8x1xf32>
    %85 = arith.mulf %81, %84 : vector<2x8x1xf32>
    %86 = vector.broadcast %85 : vector<2x8x1xf32> to vector<2x8x8xf32>
    %87 = arith.mulf %78, %86 : vector<2x8x8xf32>
    "tpu.trace_start"() <{level = 10 : i32, message = "bqk,bkd->bqd"}> : () -> ()
    %cst_55 = arith.constant dense<0.000000e+00> : vector<2x8x8xf32>
    %88 = tpu.matmul %87, %72, %cst_55 {dimension_numbers = #tpu.dot_dimension_numbers<[2], [1], [1], [2], [0, 0, 0, 1, 1, 2], [0], [0]>} : vector<2x8x8xf32>, vector<2x8x8xf32>, vector<2x8x8xf32> -> vector<2x8x8xf32>
    "tpu.trace_stop"() : () -> ()
    %89 = vector.shape_cast %88 : vector<2x8x8xf32> to vector<16x8xf32>
    %c1_56 = arith.constant 1 : index
    %c0_57 = arith.constant 0 : index
    %c0_58 = arith.constant 0 : index
    %90 = vector.load %arg6[%c1_56, %c0_57, %c0_58] : memref<4x8x32xf32, #tpu.memory_space<vmem>>, vector<1x8x32xf32>
    %91 = vector.shape_cast %90 : vector<1x8x32xf32> to vector<8x32xf32>
    %cst_59 = arith.constant dense<0.000000e+00> : vector<16x32xf32>
    %92 = tpu.matmul %89, %91, %cst_59 {dimension_numbers = #tpu.dot_dimension_numbers<[1], [0], [0], [1], [0, 0, 1, 1], [], []>} : vector<16x8xf32>, vector<8x32xf32>, vector<16x32xf32> -> vector<16x32xf32>
    %93 = arith.addf %48, %92 : vector<16x32xf32>
    %c2 = arith.constant 2 : index
    %c0_60 = arith.constant 0 : index
    %c0_61 = arith.constant 0 : index
    %94 = vector.load %arg4[%c2, %c0_60, %c0_61] : memref<12x32x8xf32, #tpu.memory_space<vmem>>, vector<1x32x8xf32>
    %95 = vector.shape_cast %94 : vector<1x32x8xf32> to vector<32x8xf32>
    %cst_62 = arith.constant dense<0.000000e+00> : vector<16x8xf32>
    %96 = tpu.matmul %0, %95, %cst_62 {dimension_numbers = #tpu.dot_dimension_numbers<[1], [0], [0], [1], [0, 0, 1, 1], [], []>} : vector<16x32xf32>, vector<32x8xf32>, vector<16x8xf32> -> vector<16x8xf32>
    %c2_63 = arith.constant 2 : index
    %c0_64 = arith.constant 0 : index
    %c0_65 = arith.constant 0 : index
    %97 = vector.load %arg5[%c2_63, %c0_64, %c0_65] : memref<12x1x8xf32, #tpu.memory_space<vmem>>, vector<1x1x8xf32>
    %98 = vector.shape_cast %97 : vector<1x1x8xf32> to vector<1x8xf32>
    %99 = vector.broadcast %98 : vector<1x8xf32> to vector<16x8xf32>
    %100 = arith.addf %96, %99 : vector<16x8xf32>
    %c6 = arith.constant 6 : index
    %c0_66 = arith.constant 0 : index
    %c0_67 = arith.constant 0 : index
    %101 = vector.load %arg4[%c6, %c0_66, %c0_67] : memref<12x32x8xf32, #tpu.memory_space<vmem>>, vector<1x32x8xf32>
    %102 = vector.shape_cast %101 : vector<1x32x8xf32> to vector<32x8xf32>
    %cst_68 = arith.constant dense<0.000000e+00> : vector<16x8xf32>
    %103 = tpu.matmul %1, %102, %cst_68 {dimension_numbers = #tpu.dot_dimension_numbers<[1], [0], [0], [1], [0, 0, 1, 1], [], []>} : vector<16x32xf32>, vector<32x8xf32>, vector<16x8xf32> -> vector<16x8xf32>
    %c6_69 = arith.constant 6 : index
    %c0_70 = arith.constant 0 : index
    %c0_71 = arith.constant 0 : index
    %104 = vector.load %arg5[%c6_69, %c0_70, %c0_71] : memref<12x1x8xf32, #tpu.memory_space<vmem>>, vector<1x1x8xf32>
    %105 = vector.shape_cast %104 : vector<1x1x8xf32> to vector<1x8xf32>
    %106 = vector.broadcast %105 : vector<1x8xf32> to vector<16x8xf32>
    %107 = arith.addf %103, %106 : vector<16x8xf32>
    %c10 = arith.constant 10 : index
    %c0_72 = arith.constant 0 : index
    %c0_73 = arith.constant 0 : index
    %108 = vector.load %arg4[%c10, %c0_72, %c0_73] : memref<12x32x8xf32, #tpu.memory_space<vmem>>, vector<1x32x8xf32>
    %109 = vector.shape_cast %108 : vector<1x32x8xf32> to vector<32x8xf32>
    %cst_74 = arith.constant dense<0.000000e+00> : vector<16x8xf32>
    %110 = tpu.matmul %2, %109, %cst_74 {dimension_numbers = #tpu.dot_dimension_numbers<[1], [0], [0], [1], [0, 0, 1, 1], [], []>} : vector<16x32xf32>, vector<32x8xf32>, vector<16x8xf32> -> vector<16x8xf32>
    %c10_75 = arith.constant 10 : index
    %c0_76 = arith.constant 0 : index
    %c0_77 = arith.constant 0 : index
    %111 = vector.load %arg5[%c10_75, %c0_76, %c0_77] : memref<12x1x8xf32, #tpu.memory_space<vmem>>, vector<1x1x8xf32>
    %112 = vector.shape_cast %111 : vector<1x1x8xf32> to vector<1x8xf32>
    %113 = vector.broadcast %112 : vector<1x8xf32> to vector<16x8xf32>
    %114 = arith.addf %110, %113 : vector<16x8xf32>
    %115 = vector.shape_cast %100 : vector<16x8xf32> to vector<2x8x8xf32>
    %116 = vector.shape_cast %107 : vector<16x8xf32> to vector<2x8x8xf32>
    %117 = vector.shape_cast %114 : vector<16x8xf32> to vector<2x8x8xf32>
    "tpu.trace_start"() <{level = 10 : i32, message = "bqd,bkd->bqk"}> : () -> ()
    %cst_78 = arith.constant dense<0.000000e+00> : vector<2x8x8xf32>
    %118 = tpu.matmul %115, %116, %cst_78 {dimension_numbers = #tpu.dot_dimension_numbers<[2], [2], [1], [1], [0, 0, 0, 1, 1, 1], [0], [0]>} : vector<2x8x8xf32>, vector<2x8x8xf32>, vector<2x8x8xf32> -> vector<2x8x8xf32>
    "tpu.trace_stop"() : () -> ()
    %cst_79 = arith.constant dense<0xFF800000> : vector<2x8xf32>
    %119 = vector.multi_reduction <maximumf>, %118, %cst_79 [2] : vector<2x8x8xf32> to vector<2x8xf32>
    %120 = vector.shape_cast %119 : vector<2x8xf32> to vector<2x8x1xf32>
    %121 = vector.broadcast %120 : vector<2x8x1xf32> to vector<2x8x8xf32>
    %122 = arith.subf %118, %121 : vector<2x8x8xf32>
    %123 = math.exp %122 : vector<2x8x8xf32>
    %cst_80 = arith.constant dense<0.000000e+00> : vector<2x8xf32>
    %124 = vector.multi_reduction <add>, %123, %cst_80 [2] : vector<2x8x8xf32> to vector<2x8xf32>
    %125 = vector.shape_cast %124 : vector<2x8xf32> to vector<2x8x1xf32>
    %126 = tpu.reciprocal %125 {approx = true} : vector<2x8x1xf32> -> vector<2x8x1xf32>
    %127 = arith.mulf %125, %126 : vector<2x8x1xf32>
    %cst_81 = arith.constant 2.000000e+00 : f32
    %128 = vector.broadcast %cst_81 : f32 to vector<2x8x1xf32>
    %129 = arith.subf %128, %127 : vector<2x8x1xf32>
    %130 = arith.mulf %126, %129 : vector<2x8x1xf32>
    %131 = vector.broadcast %130 : vector<2x8x1xf32> to vector<2x8x8xf32>
    %132 = arith.mulf %123, %131 : vector<2x8x8xf32>
    "tpu.trace_start"() <{level = 10 : i32, message = "bqk,bkd->bqd"}> : () -> ()
    %cst_82 = arith.constant dense<0.000000e+00> : vector<2x8x8xf32>
    %133 = tpu.matmul %132, %117, %cst_82 {dimension_numbers = #tpu.dot_dimension_numbers<[2], [1], [1], [2], [0, 0, 0, 1, 1, 2], [0], [0]>} : vector<2x8x8xf32>, vector<2x8x8xf32>, vector<2x8x8xf32> -> vector<2x8x8xf32>
    "tpu.trace_stop"() : () -> ()
    %134 = vector.shape_cast %133 : vector<2x8x8xf32> to vector<16x8xf32>
    %c2_83 = arith.constant 2 : index
    %c0_84 = arith.constant 0 : index
    %c0_85 = arith.constant 0 : index
    %135 = vector.load %arg6[%c2_83, %c0_84, %c0_85] : memref<4x8x32xf32, #tpu.memory_space<vmem>>, vector<1x8x32xf32>
    %136 = vector.shape_cast %135 : vector<1x8x32xf32> to vector<8x32xf32>
    %cst_86 = arith.constant dense<0.000000e+00> : vector<16x32xf32>
    %137 = tpu.matmul %134, %136, %cst_86 {dimension_numbers = #tpu.dot_dimension_numbers<[1], [0], [0], [1], [0, 0, 1, 1], [], []>} : vector<16x8xf32>, vector<8x32xf32>, vector<16x32xf32> -> vector<16x32xf32>
    %138 = arith.addf %93, %137 : vector<16x32xf32>
    %c3 = arith.constant 3 : index
    %c0_87 = arith.constant 0 : index
    %c0_88 = arith.constant 0 : index
    %139 = vector.load %arg4[%c3, %c0_87, %c0_88] : memref<12x32x8xf32, #tpu.memory_space<vmem>>, vector<1x32x8xf32>
    %140 = vector.shape_cast %139 : vector<1x32x8xf32> to vector<32x8xf32>
    %cst_89 = arith.constant dense<0.000000e+00> : vector<16x8xf32>
    %141 = tpu.matmul %0, %140, %cst_89 {dimension_numbers = #tpu.dot_dimension_numbers<[1], [0], [0], [1], [0, 0, 1, 1], [], []>} : vector<16x32xf32>, vector<32x8xf32>, vector<16x8xf32> -> vector<16x8xf32>
    %c3_90 = arith.constant 3 : index
    %c0_91 = arith.constant 0 : index
    %c0_92 = arith.constant 0 : index
    %142 = vector.load %arg5[%c3_90, %c0_91, %c0_92] : memref<12x1x8xf32, #tpu.memory_space<vmem>>, vector<1x1x8xf32>
    %143 = vector.shape_cast %142 : vector<1x1x8xf32> to vector<1x8xf32>
    %144 = vector.broadcast %143 : vector<1x8xf32> to vector<16x8xf32>
    %145 = arith.addf %141, %144 : vector<16x8xf32>
    %c7 = arith.constant 7 : index
    %c0_93 = arith.constant 0 : index
    %c0_94 = arith.constant 0 : index
    %146 = vector.load %arg4[%c7, %c0_93, %c0_94] : memref<12x32x8xf32, #tpu.memory_space<vmem>>, vector<1x32x8xf32>
    %147 = vector.shape_cast %146 : vector<1x32x8xf32> to vector<32x8xf32>
    %cst_95 = arith.constant dense<0.000000e+00> : vector<16x8xf32>
    %148 = tpu.matmul %1, %147, %cst_95 {dimension_numbers = #tpu.dot_dimension_numbers<[1], [0], [0], [1], [0, 0, 1, 1], [], []>} : vector<16x32xf32>, vector<32x8xf32>, vector<16x8xf32> -> vector<16x8xf32>
    %c7_96 = arith.constant 7 : index
    %c0_97 = arith.constant 0 : index
    %c0_98 = arith.constant 0 : index
    %149 = vector.load %arg5[%c7_96, %c0_97, %c0_98] : memref<12x1x8xf32, #tpu.memory_space<vmem>>, vector<1x1x8xf32>
    %150 = vector.shape_cast %149 : vector<1x1x8xf32> to vector<1x8xf32>
    %151 = vector.broadcast %150 : vector<1x8xf32> to vector<16x8xf32>
    %152 = arith.addf %148, %151 : vector<16x8xf32>
    %c11 = arith.constant 11 : index
    %c0_99 = arith.constant 0 : index
    %c0_100 = arith.constant 0 : index
    %153 = vector.load %arg4[%c11, %c0_99, %c0_100] : memref<12x32x8xf32, #tpu.memory_space<vmem>>, vector<1x32x8xf32>
    %154 = vector.shape_cast %153 : vector<1x32x8xf32> to vector<32x8xf32>
    %cst_101 = arith.constant dense<0.000000e+00> : vector<16x8xf32>
    %155 = tpu.matmul %2, %154, %cst_101 {dimension_numbers = #tpu.dot_dimension_numbers<[1], [0], [0], [1], [0, 0, 1, 1], [], []>} : vector<16x32xf32>, vector<32x8xf32>, vector<16x8xf32> -> vector<16x8xf32>
    %c11_102 = arith.constant 11 : index
    %c0_103 = arith.constant 0 : index
    %c0_104 = arith.constant 0 : index
    %156 = vector.load %arg5[%c11_102, %c0_103, %c0_104] : memref<12x1x8xf32, #tpu.memory_space<vmem>>, vector<1x1x8xf32>
    %157 = vector.shape_cast %156 : vector<1x1x8xf32> to vector<1x8xf32>
    %158 = vector.broadcast %157 : vector<1x8xf32> to vector<16x8xf32>
    %159 = arith.addf %155, %158 : vector<16x8xf32>
    %160 = vector.shape_cast %145 : vector<16x8xf32> to vector<2x8x8xf32>
    %161 = vector.shape_cast %152 : vector<16x8xf32> to vector<2x8x8xf32>
    %162 = vector.shape_cast %159 : vector<16x8xf32> to vector<2x8x8xf32>
    "tpu.trace_start"() <{level = 10 : i32, message = "bqd,bkd->bqk"}> : () -> ()
    %cst_105 = arith.constant dense<0.000000e+00> : vector<2x8x8xf32>
    %163 = tpu.matmul %160, %161, %cst_105 {dimension_numbers = #tpu.dot_dimension_numbers<[2], [2], [1], [1], [0, 0, 0, 1, 1, 1], [0], [0]>} : vector<2x8x8xf32>, vector<2x8x8xf32>, vector<2x8x8xf32> -> vector<2x8x8xf32>
    "tpu.trace_stop"() : () -> ()
    %cst_106 = arith.constant dense<0xFF800000> : vector<2x8xf32>
    %164 = vector.multi_reduction <maximumf>, %163, %cst_106 [2] : vector<2x8x8xf32> to vector<2x8xf32>
    %165 = vector.shape_cast %164 : vector<2x8xf32> to vector<2x8x1xf32>
    %166 = vector.broadcast %165 : vector<2x8x1xf32> to vector<2x8x8xf32>
    %167 = arith.subf %163, %166 : vector<2x8x8xf32>
    %168 = math.exp %167 : vector<2x8x8xf32>
    %cst_107 = arith.constant dense<0.000000e+00> : vector<2x8xf32>
    %169 = vector.multi_reduction <add>, %168, %cst_107 [2] : vector<2x8x8xf32> to vector<2x8xf32>
    %170 = vector.shape_cast %169 : vector<2x8xf32> to vector<2x8x1xf32>
    %171 = tpu.reciprocal %170 {approx = true} : vector<2x8x1xf32> -> vector<2x8x1xf32>
    %172 = arith.mulf %170, %171 : vector<2x8x1xf32>
    %cst_108 = arith.constant 2.000000e+00 : f32
    %173 = vector.broadcast %cst_108 : f32 to vector<2x8x1xf32>
    %174 = arith.subf %173, %172 : vector<2x8x1xf32>
    %175 = arith.mulf %171, %174 : vector<2x8x1xf32>
    %176 = vector.broadcast %175 : vector<2x8x1xf32> to vector<2x8x8xf32>
    %177 = arith.mulf %168, %176 : vector<2x8x8xf32>
    "tpu.trace_start"() <{level = 10 : i32, message = "bqk,bkd->bqd"}> : () -> ()
    %cst_109 = arith.constant dense<0.000000e+00> : vector<2x8x8xf32>
    %178 = tpu.matmul %177, %162, %cst_109 {dimension_numbers = #tpu.dot_dimension_numbers<[2], [1], [1], [2], [0, 0, 0, 1, 1, 2], [0], [0]>} : vector<2x8x8xf32>, vector<2x8x8xf32>, vector<2x8x8xf32> -> vector<2x8x8xf32>
    "tpu.trace_stop"() : () -> ()
    %179 = vector.shape_cast %178 : vector<2x8x8xf32> to vector<16x8xf32>
    %c3_110 = arith.constant 3 : index
    %c0_111 = arith.constant 0 : index
    %c0_112 = arith.constant 0 : index
    %180 = vector.load %arg6[%c3_110, %c0_111, %c0_112] : memref<4x8x32xf32, #tpu.memory_space<vmem>>, vector<1x8x32xf32>
    %181 = vector.shape_cast %180 : vector<1x8x32xf32> to vector<8x32xf32>
    %cst_113 = arith.constant dense<0.000000e+00> : vector<16x32xf32>
    %182 = tpu.matmul %179, %181, %cst_113 {dimension_numbers = #tpu.dot_dimension_numbers<[1], [0], [0], [1], [0, 0, 1, 1], [], []>} : vector<16x8xf32>, vector<8x32xf32>, vector<16x32xf32> -> vector<16x32xf32>
    %183 = arith.addf %138, %182 : vector<16x32xf32>
    %c0_114 = arith.constant 0 : index
    %c0_115 = arith.constant 0 : index
    %184 = vector.load %arg7[%c0_114, %c0_115] : memref<1x32xf32, #tpu.memory_space<vmem>>, vector<1x32xf32>
    %185 = vector.broadcast %184 : vector<1x32xf32> to vector<16x32xf32>
    %186 = arith.addf %183, %185 : vector<16x32xf32>
    %187 = arith.addf %186, %0 : vector<16x32xf32>
    %c0_116 = arith.constant 0 : index
    %c0_117 = arith.constant 0 : index
    %188 = vector.load %arg8[%c0_116, %c0_117] : memref<1x32xf32, #tpu.memory_space<vmem>>, vector<1x32xf32>
    %c0_118 = arith.constant 0 : index
    %c0_119 = arith.constant 0 : index
    %189 = vector.load %arg9[%c0_118, %c0_119] : memref<1x32xf32, #tpu.memory_space<vmem>>, vector<1x32xf32>
    %cst_120 = arith.constant dense<0.000000e+00> : vector<16xf32>
    %190 = vector.multi_reduction <add>, %187, %cst_120 [1] : vector<16x32xf32> to vector<16xf32>
    %191 = vector.shape_cast %190 : vector<16xf32> to vector<16x1xf32>
    %cst_121 = arith.constant 3.200000e+01 : f32
    %192 = vector.broadcast %cst_121 : f32 to vector<16x1xf32>
    %193 = arith.divf %191, %192 : vector<16x1xf32>
    %194 = vector.broadcast %193 : vector<16x1xf32> to vector<16x32xf32>
    %195 = arith.subf %187, %194 : vector<16x32xf32>
    %196 = arith.mulf %195, %195 : vector<16x32xf32>
    %cst_122 = arith.constant dense<0.000000e+00> : vector<16xf32>
    %197 = vector.multi_reduction <add>, %196, %cst_122 [1] : vector<16x32xf32> to vector<16xf32>
    %198 = vector.shape_cast %197 : vector<16xf32> to vector<16x1xf32>
    %cst_123 = arith.constant 3.200000e+01 : f32
    %199 = vector.broadcast %cst_123 : f32 to vector<16x1xf32>
    %200 = arith.divf %198, %199 : vector<16x1xf32>
    %201 = vector.broadcast %193 : vector<16x1xf32> to vector<16x32xf32>
    %202 = arith.subf %187, %201 : vector<16x32xf32>
    %cst_124 = arith.constant 9.99999974E-6 : f32
    %203 = vector.broadcast %cst_124 : f32 to vector<16x1xf32>
    %204 = arith.addf %200, %203 : vector<16x1xf32>
    %205 = math.rsqrt %204 : vector<16x1xf32>
    %206 = vector.broadcast %205 : vector<16x1xf32> to vector<16x32xf32>
    %207 = arith.mulf %202, %206 : vector<16x32xf32>
    %208 = vector.broadcast %188 : vector<1x32xf32> to vector<16x32xf32>
    %209 = arith.mulf %207, %208 : vector<16x32xf32>
    %210 = vector.broadcast %189 : vector<1x32xf32> to vector<16x32xf32>
    %211 = arith.addf %209, %210 : vector<16x32xf32>
    %c0_125 = arith.constant 0 : index
    %c0_126 = arith.constant 0 : index
    %212 = vector.load %arg10[%c0_125, %c0_126] : memref<32x128xf32, #tpu.memory_space<vmem>>, vector<32x128xf32>
    %cst_127 = arith.constant dense<0.000000e+00> : vector<16x128xf32>
    %213 = tpu.matmul %211, %212, %cst_127 {dimension_numbers = #tpu.dot_dimension_numbers<[1], [0], [0], [1], [0, 0, 1, 1], [], []>} : vector<16x32xf32>, vector<32x128xf32>, vector<16x128xf32> -> vector<16x128xf32>
    %c0_128 = arith.constant 0 : index
    %c0_129 = arith.constant 0 : index
    %214 = vector.load %arg11[%c0_128, %c0_129] : memref<1x128xf32, #tpu.memory_space<vmem>>, vector<1x128xf32>
    %215 = vector.broadcast %214 : vector<1x128xf32> to vector<16x128xf32>
    %216 = arith.addf %213, %215 : vector<16x128xf32>
    %cst_130 = arith.constant 0.000000e+00 : f32
    %217 = vector.broadcast %cst_130 : f32 to vector<16x128xf32>
    %218 = arith.maximumf %216, %217 : vector<16x128xf32>
    %c0_131 = arith.constant 0 : index
    %c0_132 = arith.constant 0 : index
    %219 = vector.load %arg12[%c0_131, %c0_132] : memref<128x32xf32, #tpu.memory_space<vmem>>, vector<128x32xf32>
    %cst_133 = arith.constant dense<0.000000e+00> : vector<16x32xf32>
    %220 = tpu.matmul %218, %219, %cst_133 {dimension_numbers = #tpu.dot_dimension_numbers<[1], [0], [0], [1], [0, 0, 1, 1], [], []>} : vector<16x128xf32>, vector<128x32xf32>, vector<16x32xf32> -> vector<16x32xf32>
    %c0_134 = arith.constant 0 : index
    %c0_135 = arith.constant 0 : index
    %221 = vector.load %arg13[%c0_134, %c0_135] : memref<1x32xf32, #tpu.memory_space<vmem>>, vector<1x32xf32>
    %222 = vector.broadcast %221 : vector<1x32xf32> to vector<16x32xf32>
    %223 = arith.addf %220, %222 : vector<16x32xf32>
    %224 = arith.addf %223, %211 : vector<16x32xf32>
    %c0_136 = arith.constant 0 : index
    %c0_137 = arith.constant 0 : index
    %225 = vector.load %arg14[%c0_136, %c0_137] : memref<1x32xf32, #tpu.memory_space<vmem>>, vector<1x32xf32>
    %c0_138 = arith.constant 0 : index
    %c0_139 = arith.constant 0 : index
    %226 = vector.load %arg15[%c0_138, %c0_139] : memref<1x32xf32, #tpu.memory_space<vmem>>, vector<1x32xf32>
    %cst_140 = arith.constant dense<0.000000e+00> : vector<16xf32>
    %227 = vector.multi_reduction <add>, %224, %cst_140 [1] : vector<16x32xf32> to vector<16xf32>
    %228 = vector.shape_cast %227 : vector<16xf32> to vector<16x1xf32>
    %cst_141 = arith.constant 3.200000e+01 : f32
    %229 = vector.broadcast %cst_141 : f32 to vector<16x1xf32>
    %230 = arith.divf %228, %229 : vector<16x1xf32>
    %231 = vector.broadcast %230 : vector<16x1xf32> to vector<16x32xf32>
    %232 = arith.subf %224, %231 : vector<16x32xf32>
    %233 = arith.mulf %232, %232 : vector<16x32xf32>
    %cst_142 = arith.constant dense<0.000000e+00> : vector<16xf32>
    %234 = vector.multi_reduction <add>, %233, %cst_142 [1] : vector<16x32xf32> to vector<16xf32>
    %235 = vector.shape_cast %234 : vector<16xf32> to vector<16x1xf32>
    %cst_143 = arith.constant 3.200000e+01 : f32
    %236 = vector.broadcast %cst_143 : f32 to vector<16x1xf32>
    %237 = arith.divf %235, %236 : vector<16x1xf32>
    %238 = vector.broadcast %230 : vector<16x1xf32> to vector<16x32xf32>
    %239 = arith.subf %224, %238 : vector<16x32xf32>
    %cst_144 = arith.constant 9.99999974E-6 : f32
    %240 = vector.broadcast %cst_144 : f32 to vector<16x1xf32>
    %241 = arith.addf %237, %240 : vector<16x1xf32>
    %242 = math.rsqrt %241 : vector<16x1xf32>
    %243 = vector.broadcast %242 : vector<16x1xf32> to vector<16x32xf32>
    %244 = arith.mulf %239, %243 : vector<16x32xf32>
    %245 = vector.broadcast %225 : vector<1x32xf32> to vector<16x32xf32>
    %246 = arith.mulf %244, %245 : vector<16x32xf32>
    %247 = vector.broadcast %226 : vector<1x32xf32> to vector<16x32xf32>
    %248 = arith.addf %246, %247 : vector<16x32xf32>
    %c0_145 = arith.constant 0 : index
    %c0_146 = arith.constant 0 : index
    %249 = vector.load %arg16[%c0_145, %c0_146] : memref<16x32xf32, #tpu.memory_space<vmem>>, vector<16x32xf32>
    tpu.vector_store %arg16[%c0_145, %c0_146], %248 {strides = array<i32>} : memref<16x32xf32, #tpu.memory_space<vmem>>, vector<16x32xf32>,
    return
  }
  func.func @transform_0(%arg0: i32) -> (i32, i32) {
    %c0_i32 = arith.constant 0 : i32
    %c0_i32_0 = arith.constant 0 : i32
    return %arg0, %c0_i32 : i32, i32
  }
  func.func @transform_1(%arg0: i32) -> (i32, i32) {
    %c0_i32 = arith.constant 0 : i32
    %c0_i32_0 = arith.constant 0 : i32
    return %arg0, %c0_i32 : i32, i32
  }
  func.func @transform_2(%arg0: i32) -> (i32, i32) {
    %c0_i32 = arith.constant 0 : i32
    %c0_i32_0 = arith.constant 0 : i32
    return %arg0, %c0_i32 : i32, i32
  }
  func.func @transform_3(%arg0: i32) -> (i32, i32, i32) {
    %c0_i32 = arith.constant 0 : i32
    %c0_i32_0 = arith.constant 0 : i32
    %c0_i32_1 = arith.constant 0 : i32
    %c0_i32_2 = arith.constant 0 : i32
    return %c0_i32, %c0_i32_0, %c0_i32_1 : i32, i32, i32
  }
  func.func @transform_4(%arg0: i32) -> (i32, i32, i32) {
    %c0_i32 = arith.constant 0 : i32
    %c0_i32_0 = arith.constant 0 : i32
    %c0_i32_1 = arith.constant 0 : i32
    %c0_i32_2 = arith.constant 0 : i32
    return %c0_i32, %c0_i32_0, %c0_i32_1 : i32, i32, i32
  }
  func.func @transform_5(%arg0: i32) -> (i32, i32, i32) {
    %c0_i32 = arith.constant 0 : i32
    %c0_i32_0 = arith.constant 0 : i32
    %c0_i32_1 = arith.constant 0 : i32
    %c0_i32_2 = arith.constant 0 : i32
    return %c0_i32, %c0_i32_0, %c0_i32_1 : i32, i32, i32
  }
  func.func @transform_6(%arg0: i32) -> (i32, i32) {
    %c0_i32 = arith.constant 0 : i32
    %c0_i32_0 = arith.constant 0 : i32
    %c0_i32_1 = arith.constant 0 : i32
    return %c0_i32, %c0_i32_0 : i32, i32
  }
  func.func @transform_7(%arg0: i32) -> (i32, i32) {
    %c0_i32 = arith.constant 0 : i32
    %c0_i32_0 = arith.constant 0 : i32
    %c0_i32_1 = arith.constant 0 : i32
    return %c0_i32, %c0_i32_0 : i32, i32
  }
  func.func @transform_8(%arg0: i32) -> (i32, i32) {
    %c0_i32 = arith.constant 0 : i32
    %c0_i32_0 = arith.constant 0 : i32
    %c0_i32_1 = arith.constant 0 : i32
    return %c0_i32, %c0_i32_0 : i32, i32
  }
  func.func @transform_9(%arg0: i32) -> (i32, i32) {
    %c0_i32 = arith.constant 0 : i32
    %c0_i32_0 = arith.constant 0 : i32
    %c0_i32_1 = arith.constant 0 : i32
    return %c0_i32, %c0_i32_0 : i32, i32
  }
  func.func @transform_10(%arg0: i32) -> (i32, i32) {
    %c0_i32 = arith.constant 0 : i32
    %c0_i32_0 = arith.constant 0 : i32
    %c0_i32_1 = arith.constant 0 : i32
    return %c0_i32, %c0_i32_0 : i32, i32
  }
  func.func @transform_11(%arg0: i32) -> (i32, i32) {
    %c0_i32 = arith.constant 0 : i32
    %c0_i32_0 = arith.constant 0 : i32
    %c0_i32_1 = arith.constant 0 : i32
    return %c0_i32, %c0_i32_0 : i32, i32
  }
  func.func @transform_12(%arg0: i32) -> (i32, i32) {
    %c0_i32 = arith.constant 0 : i32
    %c0_i32_0 = arith.constant 0 : i32
    %c0_i32_1 = arith.constant 0 : i32
    return %c0_i32, %c0_i32_0 : i32, i32
  }
  func.func @transform_13(%arg0: i32) -> (i32, i32) {
    %c0_i32 = arith.constant 0 : i32
    %c0_i32_0 = arith.constant 0 : i32
    %c0_i32_1 = arith.constant 0 : i32
    return %c0_i32, %c0_i32_0 : i32, i32
  }
  func.func @transform_14(%arg0: i32) -> (i32, i32) {
    %c0_i32 = arith.constant 0 : i32
    %c0_i32_0 = arith.constant 0 : i32
    %c0_i32_1 = arith.constant 0 : i32
    return %c0_i32, %c0_i32_0 : i32, i32
  }
  func.func @transform_15(%arg0: i32) -> (i32, i32) {
    %c0_i32 = arith.constant 0 : i32
    %c0_i32_0 = arith.constant 0 : i32
    return %arg0, %c0_i32 : i32, i32
  }
}

</mosaic_0001>

<llo_original>
// kernel: tpu_custom_call.1
$region0: #{tpu_custom_call.1}
  #allocation0 [shape = 'u32[]', space=smem, size = 0x4, offset = 0x4, fixed_abs, tag = 'smem constant byte address 0x4 - core index']
  #allocation1 [shape = 'u32[72,128]{1,0:T(1,128)}', space=vmem, size = 0x9000, scoped, tag = 'internal scratch']
  %s0 = inlined_call_operand.hbm [shape: f32[8,128], index: 0, kind: input, shape index: {}]
  %s1 = inlined_call_operand.hbm [shape: f32[8,128], index: 1, kind: output, shape index: {}]
  %s2 = sld [smem:[#allocation0]]
  $region41: #{tpu_custom_call.1} parent=0
    _
  %s4 = ssub.s32 1, %s2
  %s5 = scalar_select 0, %s4, %s2
  $region1: #{tpu_custom_call.1} parent=0
    #allocation2 [shape = 'u8[4096]{0}', space=vmem, size = 0x1000, scoped, tag = 'input window, operand 0, single buffered']
    #allocation3 [shape = 's32[2]{0}', space=sflag, size = 0x8, scoped, tag = 'scoped memory for tpu_custom_call.1']
    #allocation4 [shape = 's32[2]{0}', space=sflag, size = 0x8, scoped, tag = 'scoped memory for tpu_custom_call.1']
    #allocation5 [shape = 'u8[4096]{0}', space=vmem, size = 0x1000, scoped, tag = 'output window, operand 0, single buffered']
    %6 = vsyncpa [#allocation3], 0
    %7 = vsyncpa [#allocation4], 0
    loop: start=0, step=1, limit=4
    $region2: #{tpu_custom_call.1} parent=1 // loop_pre_header
      _
    $region3: #{tpu_custom_call.1} parent=1 // loop_header
      %s9 = sphi 0, %s13
      %p10 = scmp.ge.s32.totalorder %s9, 4
      %s17 = sphi 0, %s17
      %s19 = sphi 0, %s17
      %s20 = sphi 0, %s19
      %s34 = sphi 0, %s20
      %s38 = sphi 0, %s38
      %s40 = sphi 0, %s38
      %s41 = sphi 0, %s40
      %s55 = sphi 0, %s41
    $region4: #{tpu_custom_call.1} parent=1 // loop_header_branch
      %12 = sbr.rel (%p10) target = $region8
    $region5: #{tpu_custom_call.1} parent=1 // loop_body
      %s14 = ssub.s32 %s9, 1
      %s15 = ssub.s32 %s9, 2
      %s16 = sadd.s32 %s9, 1
      %s18 = sadd.s32 %s17, 1
      %p21 = scmp.eq.s32.totalorder %s9, 1
      %p22 = scmp.ne.s32.totalorder %s17, %s19
      %p23 = scmp.eq.s32.totalorder %s9, 0
      %p24 = por %p22, %p23
      %p25 = scmp.ne.s32.totalorder %s17, %s19
      %p26 = scmp.eq.s32.totalorder %s14, 1
      %p27 = por %p25, %p26
      %p28 = scmp.ne.s32.totalorder %s19, %s20
      %p29 = scmp.eq.s32.totalorder %s14, 0
      %p30 = por %p28, %p29
      %p31 = scmp.ne.s32.totalorder %s19, %s20
      %p32 = scmp.eq.s32.totalorder %s15, 1
      %p33 = por %p31, %p32
      %p35 = scmp.ne.s32.totalorder %s20, %s34
      %p36 = scmp.eq.s32.totalorder %s15, 0
      %p37 = por %p35, %p36
      %s39 = sadd.s32 %s38, 1
      %p42 = scmp.eq.s32.totalorder %s9, 1
      %p43 = scmp.ne.s32.totalorder %s38, %s40
      %p44 = scmp.eq.s32.totalorder %s9, 0
      %p45 = por %p43, %p44
      %p46 = scmp.ne.s32.totalorder %s38, %s40
      %p47 = scmp.eq.s32.totalorder %s14, 1
      %p48 = por %p46, %p47
      %p49 = scmp.ne.s32.totalorder %s40, %s41
      %p50 = scmp.eq.s32.totalorder %s14, 0
      %p51 = por %p49, %p50
      %p52 = scmp.ne.s32.totalorder %s40, %s41
      %p53 = scmp.eq.s32.totalorder %s15, 1
      %p54 = por %p52, %p53
      %p56 = scmp.ne.s32.totalorder %s41, %s55
      %p57 = scmp.eq.s32.totalorder %s15, 0
      %p58 = por %p56, %p57
      %p59 = scmp.le.s32.totalorder 1, %s9
      %p60 = scmp.lt.s32.totalorder %s9, 3
      %p61 = pnand %p59, %p60
      %p62 = pneg %p61
      // Predicated region
      $region9: #{tpu_custom_call.1} parent=5 // pred_check
        _
      $region10: #{tpu_custom_call.1} parent=5 // pred_check_branch
        %64 = sbr.rel (%p61) target = $region12
      $region11: #{tpu_custom_call.1} parent=5 // pred_region
        %s65 = ssub.s32 %s9, 1
        // Predicated region
        $region13: #{tpu_custom_call.1} parent=11 // pred_check
          %p66 = pneg %p30
        $region14: #{tpu_custom_call.1} parent=11 // pred_check_branch
          %68 = sbr.rel (%p66) target = $region16
        $region15: #{tpu_custom_call.1} parent=11 // pred_region
          %70 = vsyncadd [#allocation3], 0
          %s72 = sshll.u32 %s0, 4
          %s73 = int_to_ptr.hbm [resolvable:$true] %s72
          %s74 = sshll.u32 [#allocation2], 4
          %s75 = int_to_ptr.vmem [resolvable:$true] %s74
          %77 = dma.hbm_to_vmem [thread:$0]  %s73, 128, %s75, [#allocation3]
        $region16: #{tpu_custom_call.1} parent=11 // pred_fallthru
          _
      $region12: #{tpu_custom_call.1} parent=5 // pred_fallthru
        _
      %p78 = scmp.lt.s32.totalorder %s9, 2
      // Predicated region
      $region17: #{tpu_custom_call.1} parent=5 // pred_check
        %p79 = pneg %p78
      $region18: #{tpu_custom_call.1} parent=5 // pred_check_branch
        %81 = sbr.rel (%p79) target = $region20
      $region19: #{tpu_custom_call.1} parent=5 // pred_region
        _
      $region20: #{tpu_custom_call.1} parent=5 // pred_fallthru
        _
      %p82 = scmp.le.s32.totalorder 1, %s9
      %p83 = scmp.lt.s32.totalorder %s9, 3
      %p84 = pnand %p82, %p83
      %p85 = pneg %p84
      // Predicated region
      $region21: #{tpu_custom_call.1} parent=5 // pred_check
        _
      $region22: #{tpu_custom_call.1} parent=5 // pred_check_branch
        %87 = sbr.rel (%p84) target = $region24
      $region23: #{tpu_custom_call.1} parent=5 // pred_region
        %s88 = ssub.s32 %s9, 1
        // Predicated region
        $region25: #{tpu_custom_call.1} parent=23 // pred_check
          %p89 = pneg %p30
        $region26: #{tpu_custom_call.1} parent=23 // pred_check_branch
          %91 = sbr.rel (%p89) target = $region28
        $region27: #{tpu_custom_call.1} parent=23 // pred_region
          %93 = dma.done [#allocation3], 128
        $region28: #{tpu_custom_call.1} parent=23 // pred_fallthru
          _
        %p94 = pneg %p30
        %p95 = pneg %p27
        %p96 = pneg %p51
        %p97 = pneg %p48
        %v98 = vld [vmem:[#allocation2] sm:$0xff]
        %99 = vst [vmem:[#allocation5] sm:$0xff] %v98
        // Predicated region
        $region29: #{tpu_custom_call.1} parent=23 // pred_check
          %p100 = pneg %p48
        $region30: #{tpu_custom_call.1} parent=23 // pred_check_branch
          %102 = sbr.rel (%p100) target = $region32
        $region31: #{tpu_custom_call.1} parent=23 // pred_region
          %104 = vsyncadd [#allocation4], 0
          %s106 = sshll.u32 [#allocation5], 4
          %s107 = int_to_ptr.vmem [resolvable:$true] %s106
          %s108 = sshll.u32 %s1, 4
          %s109 = int_to_ptr.hbm [resolvable:$true] %s108
          %111 = dma.vmem_to_hbm [thread:$0]  %s107, 128, %s109, [#allocation4]
        $region32: #{tpu_custom_call.1} parent=23 // pred_fallthru
          _
        // Predicated region
        $region33: #{tpu_custom_call.1} parent=23 // pred_check
          %p112 = pneg %p48
        $region34: #{tpu_custom_call.1} parent=23 // pred_check_branch
          %114 = sbr.rel (%p112) target = $region36
        $region35: #{tpu_custom_call.1} parent=23 // pred_region
          %116 = dma.done [#allocation4], 128
        $region36: #{tpu_custom_call.1} parent=23 // pred_fallthru
          _
      $region24: #{tpu_custom_call.1} parent=5 // pred_fallthru
        _
      %p117 = scmp.le.s32.totalorder 2, %s9
      // Predicated region
      $region37: #{tpu_custom_call.1} parent=5 // pred_check
        %p118 = pneg %p117
      $region38: #{tpu_custom_call.1} parent=5 // pred_check_branch
        %120 = sbr.rel (%p118) target = $region40
      $region39: #{tpu_custom_call.1} parent=5 // pred_region
        %s121 = ssub.s32 %s9, 2
      $region40: #{tpu_custom_call.1} parent=5 // pred_fallthru
        _
    $region6: #{tpu_custom_call.1} parent=1 // loop_footer
      %s13 = sadd.s32 1, %s9
    $region7: #{tpu_custom_call.1} parent=1 // loop_footer_branch
      %8 = sbr.rel target = $region3
    $region8: #{tpu_custom_call.1} parent=1 // loop_exit
      _
    %122 = vsyncpa [#allocation3], 1
    %s123 = scalar_lea.sflag [#allocation3], 1
    %124 = vsyncpa %s123, 1
    %125 = vsyncpa [#allocation4], 1
    %s126 = scalar_lea.sflag [#allocation4], 1
    %127 = vsyncpa %s126, 1

// kernel: tpu_custom_call.1
$region0: #{tpu_custom_call.1}
  #allocation0 [shape = 'u32[]', space=smem, size = 0x4, offset = 0x4, fixed_abs, tag = 'smem constant byte address 0x4 - core index']
  #allocation1 [shape = 'u32[72,128]{1,0:T(1,128)}', space=vmem, size = 0x9000, scoped, tag = 'internal scratch']
  %s0 = inlined_call_operand.vmem [shape: f32[16,32], index: 0, kind: input, shape index: {}]
  %s1 = inlined_call_operand.vmem [shape: f32[16,32], index: 1, kind: input, shape index: {}]
  %s2 = inlined_call_operand.vmem [shape: f32[16,32], index: 2, kind: input, shape index: {}]
  %s3 = inlined_call_operand.vmem [shape: f32[12,32,8], index: 3, kind: input, shape index: {}]
  %s4 = inlined_call_operand.vmem [shape: f32[12,1,8], index: 4, kind: input, shape index: {}]
  %s5 = inlined_call_operand.vmem [shape: f32[4,8,32], index: 5, kind: input, shape index: {}]
  %s6 = inlined_call_operand.vmem [shape: f32[1,32], index: 6, kind: input, shape index: {}]
  %s7 = inlined_call_operand.vmem [shape: f32[1,32], index: 7, kind: input, shape index: {}]
  %s8 = inlined_call_operand.vmem [shape: f32[1,32], index: 8, kind: input, shape index: {}]
  %s9 = inlined_call_operand.vmem [shape: f32[32,128], index: 9, kind: input, shape index: {}]
  %s10 = inlined_call_operand.vmem [shape: f32[1,128], index: 10, kind: input, shape index: {}]
  %s11 = inlined_call_operand.vmem [shape: f32[128,32], index: 11, kind: input, shape index: {}]
  %s12 = inlined_call_operand.vmem [shape: f32[1,32], index: 12, kind: input, shape index: {}]
  %s13 = inlined_call_operand.vmem [shape: f32[1,32], index: 13, kind: input, shape index: {}]
  %s14 = inlined_call_operand.vmem [shape: f32[1,32], index: 14, kind: input, shape index: {}]
  %s15 = inlined_call_operand.hbm [shape: f32[16,32], index: 15, kind: output, shape index: {}]
  %s16 = sld [smem:[#allocation0]]
  $region70: #{tpu_custom_call.1} parent=0
    _
  %s18 = ssub.s32 1, %s16
  %s19 = scalar_select 0, %s18, %s16
  $region1: #{tpu_custom_call.1} parent=0
    #allocation2 [shape = 'u8[8192]{0}', space=vmem, size = 0x2000, scoped, tag = 'output window, operand 0, single buffered']
    #allocation3 [shape = 's32[1]{0}', space=sflag, size = 0x4, scoped, tag = 'scoped memory for tpu_custom_call.1']
    %20 = vsyncpa [#allocation3], 0
    // Predicated region
    $region2: #{tpu_custom_call.1} parent=1 // pred_check
      _
    $region3: #{tpu_custom_call.1} parent=1 // pred_check_branch
      %22 = sbr.rel (0) target = $region5
    $region4: #{tpu_custom_call.1} parent=1 // pred_region
      _
    $region5: #{tpu_custom_call.1} parent=1 // pred_fallthru
      _
    // Predicated region
    $region6: #{tpu_custom_call.1} parent=1 // pred_check
      _
    $region7: #{tpu_custom_call.1} parent=1 // pred_check_branch
      %24 = sbr.rel (0) target = $region9
    $region8: #{tpu_custom_call.1} parent=1 // pred_region
      _
    $region9: #{tpu_custom_call.1} parent=1 // pred_fallthru
      _
    // Predicated region
    $region10: #{tpu_custom_call.1} parent=1 // pred_check
      _
    $region11: #{tpu_custom_call.1} parent=1 // pred_check_branch
      %26 = sbr.rel (0) target = $region13
    $region12: #{tpu_custom_call.1} parent=1 // pred_region
      _
    $region13: #{tpu_custom_call.1} parent=1 // pred_fallthru
      _
    // Predicated region
    $region14: #{tpu_custom_call.1} parent=1 // pred_check
      _
    $region15: #{tpu_custom_call.1} parent=1 // pred_check_branch
      %28 = sbr.rel (0) target = $region17
    $region16: #{tpu_custom_call.1} parent=1 // pred_region
      _
    $region17: #{tpu_custom_call.1} parent=1 // pred_fallthru
      _
    // Predicated region
    $region18: #{tpu_custom_call.1} parent=1 // pred_check
      _
    $region19: #{tpu_custom_call.1} parent=1 // pred_check_branch
      %30 = sbr.rel (0) target = $region21
    $region20: #{tpu_custom_call.1} parent=1 // pred_region
      _
    $region21: #{tpu_custom_call.1} parent=1 // pred_fallthru
      _
    // Predicated region
    $region22: #{tpu_custom_call.1} parent=1 // pred_check
      _
    $region23: #{tpu_custom_call.1} parent=1 // pred_check_branch
      %32 = sbr.rel (0) target = $region25
    $region24: #{tpu_custom_call.1} parent=1 // pred_region
      _
    $region25: #{tpu_custom_call.1} parent=1 // pred_fallthru
      _
    // Predicated region
    $region26: #{tpu_custom_call.1} parent=1 // pred_check
      _
    $region27: #{tpu_custom_call.1} parent=1 // pred_check_branch
      %34 = sbr.rel (0) target = $region29
    $region28: #{tpu_custom_call.1} parent=1 // pred_region
      _
    $region29: #{tpu_custom_call.1} parent=1 // pred_fallthru
      _
    // Predicated region
    $region30: #{tpu_custom_call.1} parent=1 // pred_check
      _
    $region31: #{tpu_custom_call.1} parent=1 // pred_check_branch
      %36 = sbr.rel (0) target = $region33
    $region32: #{tpu_custom_call.1} parent=1 // pred_region
      _
    $region33: #{tpu_custom_call.1} parent=1 // pred_fallthru
      _
    // Predicated region
    $region34: #{tpu_custom_call.1} parent=1 // pred_check
      _
    $region35: #{tpu_custom_call.1} parent=1 // pred_check_branch
      %38 = sbr.rel (0) target = $region37
    $region36: #{tpu_custom_call.1} parent=1 // pred_region
      _
    $region37: #{tpu_custom_call.1} parent=1 // pred_fallthru
      _
    // Predicated region
    $region38: #{tpu_custom_call.1} parent=1 // pred_check
      _
    $region39: #{tpu_custom_call.1} parent=1 // pred_check_branch
      %40 = sbr.rel (0) target = $region41
    $region40: #{tpu_custom_call.1} parent=1 // pred_region
      _
    $region41: #{tpu_custom_call.1} parent=1 // pred_fallthru
      _
    // Predicated region
    $region42: #{tpu_custom_call.1} parent=1 // pred_check
      _
    $region43: #{tpu_custom_call.1} parent=1 // pred_check_branch
      %42 = sbr.rel (0) target = $region45
    $region44: #{tpu_custom_call.1} parent=1 // pred_region
      _
    $region45: #{tpu_custom_call.1} parent=1 // pred_fallthru
      _
    // Predicated region
    $region46: #{tpu_custom_call.1} parent=1 // pred_check
      _
    $region47: #{tpu_custom_call.1} parent=1 // pred_check_branch
      %44 = sbr.rel (0) target = $region49
    $region48: #{tpu_custom_call.1} parent=1 // pred_region
      _
    $region49: #{tpu_custom_call.1} parent=1 // pred_fallthru
      _
    // Predicated region
    $region50: #{tpu_custom_call.1} parent=1 // pred_check
      _
    $region51: #{tpu_custom_call.1} parent=1 // pred_check_branch
      %46 = sbr.rel (0) target = $region53
    $region52: #{tpu_custom_call.1} parent=1 // pred_region
      _
    $region53: #{tpu_custom_call.1} parent=1 // pred_fallthru
      _
    // Predicated region
    $region54: #{tpu_custom_call.1} parent=1 // pred_check
      _
    $region55: #{tpu_custom_call.1} parent=1 // pred_check_branch
      %48 = sbr.rel (0) target = $region57
    $region56: #{tpu_custom_call.1} parent=1 // pred_region
      _
    $region57: #{tpu_custom_call.1} parent=1 // pred_fallthru
      _
    // Predicated region
    $region58: #{tpu_custom_call.1} parent=1 // pred_check
      _
    $region59: #{tpu_custom_call.1} parent=1 // pred_check_branch
      %50 = sbr.rel (0) target = $region61
    $region60: #{tpu_custom_call.1} parent=1 // pred_region
      _
    $region61: #{tpu_custom_call.1} parent=1 // pred_fallthru
      _
    %v51 = vld [vmem:[%s0] sm:$0xff]
    %v52 = vld [vmem:[%s0 + $0x8] sm:$0xff]
    %v53 = vld [vmem:[%s1] sm:$0xff]
    %v54 = vld [vmem:[%s1 + $0x8] sm:$0xff]
    %v55 = vld [vmem:[%s2] sm:$0xff]
    %v56 = vld [vmem:[%s2 + $0x8] sm:$0xff]
    %v57 = vld [vmem:[%s3] sm:$0xff]
    %v58 = vld [vmem:[%s3 + $0x8] sm:$0xff]
    %v59 = vld [vmem:[%s3 + $0x10] sm:$0xff]
    %v60 = vld [vmem:[%s3 + $0x18] sm:$0xff]
    %v61 = vld [vmem:[%s4] sm:$0x1]
    %v63 = vperm.slane %v61, 0
    %vm65 = vcmask 261120
    %v67 = vsel %vm65, %v51, 0
    %v70 = vsel %vm65, %v52, 0
    %72 = vmatpush.msra.mxu0 0.0
    %73 = vmatpush.msra.mxu0 0.0
    %74 = vmatpush.msra.mxu0 0.0
    %75 = vmatpush.msra.mxu0 0.0
    %76 = vmatpush.msra.mxu0 0.0
    %77 = vmatpush.msra.mxu0 0.0
    %78 = vmatpush.msra.mxu0 0.0
    %79 = vmatpush.msra.mxu0 0.0
    %80 = vmatpush.msra.mxu0 0.0
    %81 = vmatpush.msra.mxu0 0.0
    %82 = vmatpush.msra.mxu0 0.0
    %83 = vmatpush.msra.mxu0 0.0
    %84 = vmatpush.msra.mxu0 %v60
    %85 = vmatpush.msra.mxu0 %v59
    %86 = vmatpush.msra.mxu0 %v58
    %87 = vmatpush.msra.mxu0 %v57
    %88 = vmatmul.f32.gmra.mxu0 %v67
    %v89 = vpop.f32.mrf.mxu0
    %v90 = vadd.f32 %v63, %v89
    %91 = vmatmul.f32.gmra.mxu0 %v70
    %v92 = vpop.f32.mrf.mxu0
    %v93 = vadd.f32 %v63, %v92
    %94 = vdwg.mxu0
    %s95 = scalar_lea.vmem %s3, 128
    %v96 = vld [vmem:[%s95] sm:$0xff]
    %v97 = vld [vmem:[%s95 + $0x8] sm:$0xff]
    %v98 = vld [vmem:[%s95 + $0x10] sm:$0xff]
    %v99 = vld [vmem:[%s95 + $0x18] sm:$0xff]
    %s100 = scalar_lea.vmem %s4, 4
    %v101 = vld [vmem:[%s100] sm:$0x1]
    %v103 = vperm.slane %v101, 0
    %v106 = vsel %vm65, %v53, 0
    %v109 = vsel %vm65, %v54, 0
    %111 = vmatpush.msra.mxu0 0.0
    %112 = vmatpush.msra.mxu0 0.0
    %113 = vmatpush.msra.mxu0 0.0
    %114 = vmatpush.msra.mxu0 0.0
    %115 = vmatpush.msra.mxu0 0.0
    %116 = vmatpush.msra.mxu0 0.0
    %117 = vmatpush.msra.mxu0 0.0
    %118 = vmatpush.msra.mxu0 0.0
    %119 = vmatpush.msra.mxu0 0.0
    %120 = vmatpush.msra.mxu0 0.0
    %121 = vmatpush.msra.mxu0 0.0
    %122 = vmatpush.msra.mxu0 0.0
    %123 = vmatpush.msra.mxu0 %v99
    %124 = vmatpush.msra.mxu0 %v98
    %125 = vmatpush.msra.mxu0 %v97
    %126 = vmatpush.msra.mxu0 %v96
    %127 = vmatmul.f32.gmra.mxu0 %v106
    %v128 = vpop.f32.mrf.mxu0
    %v129 = vadd.f32 %v103, %v128
    %130 = vmatmul.f32.gmra.mxu0 %v109
    %v131 = vpop.f32.mrf.mxu0
    %v132 = vadd.f32 %v103, %v131
    %133 = vdwg.mxu0
    %s134 = scalar_lea.vmem %s3, 256
    %v135 = vld [vmem:[%s134] sm:$0xff]
    %v136 = vld [vmem:[%s134 + $0x8] sm:$0xff]
    %v137 = vld [vmem:[%s134 + $0x10] sm:$0xff]
    %v138 = vld [vmem:[%s134 + $0x18] sm:$0xff]
    %s139 = scalar_lea.vmem %s4, 8
    %v140 = vld [vmem:[%s139] sm:$0x1]
    %v142 = vperm.slane %v140, 0
    %v145 = vsel %vm65, %v55, 0
    %v148 = vsel %vm65, %v56, 0
    %150 = vmatpush.msra.mxu0 0.0
    %151 = vmatpush.msra.mxu0 0.0
    %152 = vmatpush.msra.mxu0 0.0
    %153 = vmatpush.msra.mxu0 0.0
    %154 = vmatpush.msra.mxu0 0.0
    %155 = vmatpush.msra.mxu0 0.0
    %156 = vmatpush.msra.mxu0 0.0
    %157 = vmatpush.msra.mxu0 0.0
    %158 = vmatpush.msra.mxu0 0.0
    %159 = vmatpush.msra.mxu0 0.0
    %160 = vmatpush.msra.mxu0 0.0
    %161 = vmatpush.msra.mxu0 0.0
    %162 = vmatpush.msra.mxu0 %v138
    %163 = vmatpush.msra.mxu0 %v137
    %164 = vmatpush.msra.mxu0 %v136
    %165 = vmatpush.msra.mxu0 %v135
    %166 = vmatmul.f32.gmra.mxu0 %v145
    %v167 = vpop.f32.mrf.mxu0
    %v168 = vadd.f32 %v142, %v167
    %169 = vmatmul.f32.gmra.mxu0 %v148
    %v170 = vpop.f32.mrf.mxu0
    %v171 = vadd.f32 %v142, %v170
    %172 = vdwg.mxu0
    %vm173 = vcmask 64512
    %v175 = vsel %vm173, %v90, 0
    %v178 = vsel %vm173, %v129, 0
    %180 = vmatpush.xpose.msra.mxu0 0.0
    %181 = vmatpush.xpose.msra.mxu0 0.0
    %182 = vmatpush.xpose.msra.mxu0 0.0
    %183 = vmatpush.xpose.msra.mxu0 0.0
    %184 = vmatpush.xpose.msra.mxu0 0.0
    %185 = vmatpush.xpose.msra.mxu0 0.0
    %186 = vmatpush.xpose.msra.mxu0 0.0
    %187 = vmatpush.xpose.msra.mxu0 0.0
    %188 = vmatpush.xpose.msra.mxu0 0.0
    %189 = vmatpush.xpose.msra.mxu0 0.0
    %190 = vmatpush.xpose.msra.mxu0 0.0
    %191 = vmatpush.xpose.msra.mxu0 0.0
    %192 = vmatpush.xpose.msra.mxu0 0.0
    %193 = vmatpush.xpose.msra.mxu0 0.0
    %194 = vmatpush.xpose.msra.mxu0 0.0
    %195 = vmatpush.xpose.msra.mxu0 %v178
    %196 = vmatmul.f32.gmra.mxu0 %v175
    %v197 = vpop.f32.mrf.mxu0
    %v198 = vadd.f32 0.0, %v197
    %199 = vdwg.mxu0
    %v201 = vsel %vm173, %v93, 0
    %v204 = vsel %vm173, %v132, 0
    %206 = vmatpush.xpose.msra.mxu0 0.0
    %207 = vmatpush.xpose.msra.mxu0 0.0
    %208 = vmatpush.xpose.msra.mxu0 0.0
    %209 = vmatpush.xpose.msra.mxu0 0.0
    %210 = vmatpush.xpose.msra.mxu0 0.0
    %211 = vmatpush.xpose.msra.mxu0 0.0
    %212 = vmatpush.xpose.msra.mxu0 0.0
    %213 = vmatpush.xpose.msra.mxu0 0.0
    %214 = vmatpush.xpose.msra.mxu0 0.0
    %215 = vmatpush.xpose.msra.mxu0 0.0
    %216 = vmatpush.xpose.msra.mxu0 0.0
    %217 = vmatpush.xpose.msra.mxu0 0.0
    %218 = vmatpush.xpose.msra.mxu0 0.0
    %219 = vmatpush.xpose.msra.mxu0 0.0
    %220 = vmatpush.xpose.msra.mxu0 0.0
    %221 = vmatpush.xpose.msra.mxu0 %v204
    %222 = vmatmul.f32.gmra.mxu0 %v201
    %v223 = vpop.f32.mrf.mxu0
    %v224 = vadd.f32 0.0, %v223
    %225 = vdwg.mxu0
    %v226 = vsel %vm173, %v198, -inf
    %227 = vmax.xlane.f32.xlu0 %v226
    %v228 = vpop.xlane.xlu0 %227
    %v229 = vsel %vm173, %v224, -inf
    %230 = vmax.xlane.f32.xlu0 %v229
    %v231 = vpop.xlane.xlu0 %230
    %v232 = vsub.f32 %v198, %v228
    %v233 = vsub.f32 %v224, %v231
    %v234 = vmul.f32 %v232, 1.442695
    %v235 = vpow.pop %v234
    %v236 = vmul.f32 %v233, 1.442695
    %v237 = vpow.pop %v236
    %v238 = vsel %vm173, %v235, 0.0
    %239 = vadd.xlane.f32.xlu0 %v238
    %v240 = vpop.xlane.xlu0 %239
    %v241 = vsel %vm173, %v237, 0.0
    %242 = vadd.xlane.f32.xlu0 %v241
    %v243 = vpop.xlane.xlu0 %242
    %v244 = vrcp.pop %v240
    %v245 = vrcp.pop %v243
    %v246 = vmul.f32 %v240, %v244
    %v247 = vmul.f32 %v243, %v245
    %v248 = vsub.f32 2.0, %v246
    %v249 = vsub.f32 2.0, %v247
    %v250 = vmul.f32 %v244, %v248
    %v251 = vmul.f32 %v245, %v249
    %v252 = vmul.f32 %v235, %v250
    %v253 = vmul.f32 %v237, %v251
    %v255 = vsel %vm173, %v252, 0
    %257 = vmatpush.msra.mxu0 0.0
    %258 = vmatpush.msra.mxu0 0.0
    %259 = vmatpush.msra.mxu0 0.0
    %260 = vmatpush.msra.mxu0 0.0
    %261 = vmatpush.msra.mxu0 0.0
    %262 = vmatpush.msra.mxu0 0.0
    %263 = vmatpush.msra.mxu0 0.0
    %264 = vmatpush.msra.mxu0 0.0
    %265 = vmatpush.msra.mxu0 0.0
    %266 = vmatpush.msra.mxu0 0.0
    %267 = vmatpush.msra.mxu0 0.0
    %268 = vmatpush.msra.mxu0 0.0
    %269 = vmatpush.msra.mxu0 0.0
    %270 = vmatpush.msra.mxu0 0.0
    %271 = vmatpush.msra.mxu0 0.0
    %272 = vmatpush.msra.mxu0 %v168
    %273 = vmatmul.f32.gmra.mxu0 %v255
    %v274 = vpop.f32.mrf.mxu0
    %v275 = vadd.f32 0.0, %v274
    %276 = vdwg.mxu0
    %v278 = vsel %vm173, %v253, 0
    %280 = vmatpush.msra.mxu0 0.0
    %281 = vmatpush.msra.mxu0 0.0
    %282 = vmatpush.msra.mxu0 0.0
    %283 = vmatpush.msra.mxu0 0.0
    %284 = vmatpush.msra.mxu0 0.0
    %285 = vmatpush.msra.mxu0 0.0
    %286 = vmatpush.msra.mxu0 0.0
    %287 = vmatpush.msra.mxu0 0.0
    %288 = vmatpush.msra.mxu0 0.0
    %289 = vmatpush.msra.mxu0 0.0
    %290 = vmatpush.msra.mxu0 0.0
    %291 = vmatpush.msra.mxu0 0.0
    %292 = vmatpush.msra.mxu0 0.0
    %293 = vmatpush.msra.mxu0 0.0
    %294 = vmatpush.msra.mxu0 0.0
    %295 = vmatpush.msra.mxu0 %v171
    %296 = vmatmul.f32.gmra.mxu0 %v278
    %v297 = vpop.f32.mrf.mxu0
    %v298 = vadd.f32 0.0, %v297
    %299 = vdwg.mxu0
    %v300 = vld [vmem:[%s5] sm:$0xff]
    %s301 = scalar_lea.vmem %s3, 32
    %v302 = vld [vmem:[%s301] sm:$0xff]
    %v303 = vld [vmem:[%s301 + $0x8] sm:$0xff]
    %v304 = vld [vmem:[%s301 + $0x10] sm:$0xff]
    %v305 = vld [vmem:[%s301 + $0x18] sm:$0xff]
    %s306 = scalar_lea.vmem %s4, 1
    %v307 = vld [vmem:[%s306] sm:$0x1]
    %v309 = vperm.slane %v307, 0
    %311 = vmatpush.msra.mxu0 0.0
    %312 = vmatpush.msra.mxu0 0.0
    %313 = vmatpush.msra.mxu0 0.0
    %314 = vmatpush.msra.mxu0 0.0
    %315 = vmatpush.msra.mxu0 0.0
    %316 = vmatpush.msra.mxu0 0.0
    %317 = vmatpush.msra.mxu0 0.0
    %318 = vmatpush.msra.mxu0 0.0
    %319 = vmatpush.msra.mxu0 0.0
    %320 = vmatpush.msra.mxu0 0.0
    %321 = vmatpush.msra.mxu0 0.0
    %322 = vmatpush.msra.mxu0 0.0
    %323 = vmatpush.msra.mxu0 %v305
    %324 = vmatpush.msra.mxu0 %v304
    %325 = vmatpush.msra.mxu0 %v303
    %326 = vmatpush.msra.mxu0 %v302
    %327 = vmatmul.f32.gmra.mxu0 %v67
    %v328 = vpop.f32.mrf.mxu0
    %v329 = vadd.f32 %v309, %v328
    %330 = vmatmul.f32.gmra.mxu0 %v70
    %v331 = vpop.f32.mrf.mxu0
    %v332 = vadd.f32 %v309, %v331
    %333 = vdwg.mxu0
    %s334 = scalar_lea.vmem %s3, 160
    %v335 = vld [vmem:[%s334] sm:$0xff]
    %v336 = vld [vmem:[%s334 + $0x8] sm:$0xff]
    %v337 = vld [vmem:[%s334 + $0x10] sm:$0xff]
    %v338 = vld [vmem:[%s334 + $0x18] sm:$0xff]
    %s339 = scalar_lea.vmem %s4, 5
    %v340 = vld [vmem:[%s339] sm:$0x1]
    %v342 = vperm.slane %v340, 0
    %344 = vmatpush.msra.mxu0 0.0
    %345 = vmatpush.msra.mxu0 0.0
    %346 = vmatpush.msra.mxu0 0.0
    %347 = vmatpush.msra.mxu0 0.0
    %348 = vmatpush.msra.mxu0 0.0
    %349 = vmatpush.msra.mxu0 0.0
    %350 = vmatpush.msra.mxu0 0.0
    %351 = vmatpush.msra.mxu0 0.0
    %352 = vmatpush.msra.mxu0 0.0
    %353 = vmatpush.msra.mxu0 0.0
    %354 = vmatpush.msra.mxu0 0.0
    %355 = vmatpush.msra.mxu0 0.0
    %356 = vmatpush.msra.mxu0 %v338
    %357 = vmatpush.msra.mxu0 %v337
    %358 = vmatpush.msra.mxu0 %v336
    %359 = vmatpush.msra.mxu0 %v335
    %360 = vmatmul.f32.gmra.mxu0 %v106
    %v361 = vpop.f32.mrf.mxu0
    %v362 = vadd.f32 %v342, %v361
    %363 = vmatmul.f32.gmra.mxu0 %v109
    %v364 = vpop.f32.mrf.mxu0
    %v365 = vadd.f32 %v342, %v364
    %366 = vdwg.mxu0
    %s367 = scalar_lea.vmem %s3, 288
    %v368 = vld [vmem:[%s367] sm:$0xff]
    %v369 = vld [vmem:[%s367 + $0x8] sm:$0xff]
    %v370 = vld [vmem:[%s367 + $0x10] sm:$0xff]
    %v371 = vld [vmem:[%s367 + $0x18] sm:$0xff]
    %s372 = scalar_lea.vmem %s4, 9
    %v373 = vld [vmem:[%s372] sm:$0x1]
    %v375 = vperm.slane %v373, 0
    %377 = vmatpush.msra.mxu0 0.0
    %378 = vmatpush.msra.mxu0 0.0
    %379 = vmatpush.msra.mxu0 0.0
    %380 = vmatpush.msra.mxu0 0.0
    %381 = vmatpush.msra.mxu0 0.0
    %382 = vmatpush.msra.mxu0 0.0
    %383 = vmatpush.msra.mxu0 0.0
    %384 = vmatpush.msra.mxu0 0.0
    %385 = vmatpush.msra.mxu0 0.0
    %386 = vmatpush.msra.mxu0 0.0
    %387 = vmatpush.msra.mxu0 0.0
    %388 = vmatpush.msra.mxu0 0.0
    %389 = vmatpush.msra.mxu0 %v371
    %390 = vmatpush.msra.mxu0 %v370
    %391 = vmatpush.msra.mxu0 %v369
    %392 = vmatpush.msra.mxu0 %v368
    %393 = vmatmul.f32.gmra.mxu0 %v145
    %v394 = vpop.f32.mrf.mxu0
    %v395 = vadd.f32 %v375, %v394
    %396 = vmatmul.f32.gmra.mxu0 %v148
    %v397 = vpop.f32.mrf.mxu0
    %v398 = vadd.f32 %v375, %v397
    %399 = vdwg.mxu0
    %v401 = vsel %vm173, %v329, 0
    %v404 = vsel %vm173, %v362, 0
    %406 = vmatpush.xpose.msra.mxu0 0.0
    %407 = vmatpush.xpose.msra.mxu0 0.0
    %408 = vmatpush.xpose.msra.mxu0 0.0
    %409 = vmatpush.xpose.msra.mxu0 0.0
    %410 = vmatpush.xpose.msra.mxu0 0.0
    %411 = vmatpush.xpose.msra.mxu0 0.0
    %412 = vmatpush.xpose.msra.mxu0 0.0
    %413 = vmatpush.xpose.msra.mxu0 0.0
    %414 = vmatpush.xpose.msra.mxu0 0.0
    %415 = vmatpush.xpose.msra.mxu0 0.0
    %416 = vmatpush.xpose.msra.mxu0 0.0
    %417 = vmatpush.xpose.msra.mxu0 0.0
    %418 = vmatpush.xpose.msra.mxu0 0.0
    %419 = vmatpush.xpose.msra.mxu0 0.0
    %420 = vmatpush.xpose.msra.mxu0 0.0
    %421 = vmatpush.xpose.msra.mxu0 %v404
    %422 = vmatmul.f32.gmra.mxu0 %v401
    %v423 = vpop.f32.mrf.mxu0
    %v424 = vadd.f32 0.0, %v423
    %425 = vdwg.mxu0
    %v427 = vsel %vm173, %v332, 0
    %v430 = vsel %vm173, %v365, 0
    %432 = vmatpush.xpose.msra.mxu0 0.0
    %433 = vmatpush.xpose.msra.mxu0 0.0
    %434 = vmatpush.xpose.msra.mxu0 0.0
    %435 = vmatpush.xpose.msra.mxu0 0.0
    %436 = vmatpush.xpose.msra.mxu0 0.0
    %437 = vmatpush.xpose.msra.mxu0 0.0
    %438 = vmatpush.xpose.msra.mxu0 0.0
    %439 = vmatpush.xpose.msra.mxu0 0.0
    %440 = vmatpush.xpose.msra.mxu0 0.0
    %441 = vmatpush.xpose.msra.mxu0 0.0
    %442 = vmatpush.xpose.msra.mxu0 0.0
    %443 = vmatpush.xpose.msra.mxu0 0.0
    %444 = vmatpush.xpose.msra.mxu0 0.0
    %445 = vmatpush.xpose.msra.mxu0 0.0
    %446 = vmatpush.xpose.msra.mxu0 0.0
    %447 = vmatpush.xpose.msra.mxu0 %v430
    %448 = vmatmul.f32.gmra.mxu0 %v427
    %v449 = vpop.f32.mrf.mxu0
    %v450 = vadd.f32 0.0, %v449
    %451 = vdwg.mxu0
    %v452 = vsel %vm173, %v424, -inf
    %453 = vmax.xlane.f32.xlu0 %v452
    %v454 = vpop.xlane.xlu0 %453
    %v455 = vsel %vm173, %v450, -inf
    %456 = vmax.xlane.f32.xlu0 %v455
    %v457 = vpop.xlane.xlu0 %456
    %v458 = vsub.f32 %v424, %v454
    %v459 = vsub.f32 %v450, %v457
    %v460 = vmul.f32 %v458, 1.442695
    %v461 = vpow.pop %v460
    %v462 = vmul.f32 %v459, 1.442695
    %v463 = vpow.pop %v462
    %v464 = vsel %vm173, %v461, 0.0
    %465 = vadd.xlane.f32.xlu0 %v464
    %v466 = vpop.xlane.xlu0 %465
    %v467 = vsel %vm173, %v463, 0.0
    %468 = vadd.xlane.f32.xlu0 %v467
    %v469 = vpop.xlane.xlu0 %468
    %v470 = vrcp.pop %v466
    %v471 = vrcp.pop %v469
    %v472 = vmul.f32 %v466, %v470
    %v473 = vmul.f32 %v469, %v471
    %v474 = vsub.f32 2.0, %v472
    %v475 = vsub.f32 2.0, %v473
    %v476 = vmul.f32 %v470, %v474
    %v477 = vmul.f32 %v471, %v475
    %v478 = vmul.f32 %v461, %v476
    %v479 = vmul.f32 %v463, %v477
    %v481 = vsel %vm173, %v478, 0
    %483 = vmatpush.msra.mxu0 0.0
    %484 = vmatpush.msra.mxu0 0.0
    %485 = vmatpush.msra.mxu0 0.0
    %486 = vmatpush.msra.mxu0 0.0
    %487 = vmatpush.msra.mxu0 0.0
    %488 = vmatpush.msra.mxu0 0.0
    %489 = vmatpush.msra.mxu0 0.0
    %490 = vmatpush.msra.mxu0 0.0
    %491 = vmatpush.msra.mxu0 0.0
    %492 = vmatpush.msra.mxu0 0.0
    %493 = vmatpush.msra.mxu0 0.0
    %494 = vmatpush.msra.mxu0 0.0
    %495 = vmatpush.msra.mxu0 0.0
    %496 = vmatpush.msra.mxu0 0.0
    %497 = vmatpush.msra.mxu0 0.0
    %498 = vmatpush.msra.mxu0 %v395
    %499 = vmatmul.f32.gmra.mxu0 %v481
    %v500 = vpop.f32.mrf.mxu0
    %v501 = vadd.f32 0.0, %v500
    %502 = vdwg.mxu0
    %v504 = vsel %vm173, %v479, 0
    %506 = vmatpush.msra.mxu0 0.0
    %507 = vmatpush.msra.mxu0 0.0
    %508 = vmatpush.msra.mxu0 0.0
    %509 = vmatpush.msra.mxu0 0.0
    %510 = vmatpush.msra.mxu0 0.0
    %511 = vmatpush.msra.mxu0 0.0
    %512 = vmatpush.msra.mxu0 0.0
    %513 = vmatpush.msra.mxu0 0.0
    %514 = vmatpush.msra.mxu0 0.0
    %515 = vmatpush.msra.mxu0 0.0
    %516 = vmatpush.msra.mxu0 0.0
    %517 = vmatpush.msra.mxu0 0.0
    %518 = vmatpush.msra.mxu0 0.0
    %519 = vmatpush.msra.mxu0 0.0
    %520 = vmatpush.msra.mxu0 0.0
    %521 = vmatpush.msra.mxu0 %v398
    %522 = vmatmul.f32.gmra.mxu0 %v504
    %v523 = vpop.f32.mrf.mxu0
    %v524 = vadd.f32 0.0, %v523
    %525 = vdwg.mxu0
    %s526 = scalar_lea.vmem %s5, 8
    %v527 = vld [vmem:[%s526] sm:$0xff]
    %v529 = vsel %vm173, %v501, 0
    %v532 = vsel %vm173, %v524, 0
    %534 = vmatpush.msra.mxu0 0.0
    %535 = vmatpush.msra.mxu0 0.0
    %536 = vmatpush.msra.mxu0 0.0
    %537 = vmatpush.msra.mxu0 0.0
    %538 = vmatpush.msra.mxu0 0.0
    %539 = vmatpush.msra.mxu0 0.0
    %540 = vmatpush.msra.mxu0 0.0
    %541 = vmatpush.msra.mxu0 0.0
    %542 = vmatpush.msra.mxu0 0.0
    %543 = vmatpush.msra.mxu0 0.0
    %544 = vmatpush.msra.mxu0 0.0
    %545 = vmatpush.msra.mxu0 0.0
    %546 = vmatpush.msra.mxu0 0.0
    %547 = vmatpush.msra.mxu0 0.0
    %548 = vmatpush.msra.mxu0 0.0
    %549 = vmatpush.msra.mxu0 %v527
    %550 = vmatmul.f32.gmra.mxu0 %v529
    %v551 = vpop.f32.mrf.mxu0
    %v552 = vadd.f32 0.0, %v551
    %553 = vmatmul.f32.gmra.mxu0 %v532
    %v554 = vpop.f32.mrf.mxu0
    %v555 = vadd.f32 0.0, %v554
    %556 = vdwg.mxu0
    %v558 = vsel %vm173, %v275, 0
    %v561 = vsel %vm173, %v298, 0
    %563 = vmatpush.msra.mxu0 0.0
    %564 = vmatpush.msra.mxu0 0.0
    %565 = vmatpush.msra.mxu0 0.0
    %566 = vmatpush.msra.mxu0 0.0
    %567 = vmatpush.msra.mxu0 0.0
    %568 = vmatpush.msra.mxu0 0.0
    %569 = vmatpush.msra.mxu0 0.0
    %570 = vmatpush.msra.mxu0 0.0
    %571 = vmatpush.msra.mxu0 0.0
    %572 = vmatpush.msra.mxu0 0.0
    %573 = vmatpush.msra.mxu0 0.0
    %574 = vmatpush.msra.mxu0 0.0
    %575 = vmatpush.msra.mxu0 0.0
    %576 = vmatpush.msra.mxu0 0.0
    %577 = vmatpush.msra.mxu0 0.0
    %578 = vmatpush.msra.mxu0 %v300
    %579 = vmatmul.f32.gmra.mxu0 %v558
    %v580 = vpop.f32.mrf.mxu0
    %v581 = vadd.f32 %v552, %v580
    %582 = vmatmul.f32.gmra.mxu0 %v561
    %v583 = vpop.f32.mrf.mxu0
    %v584 = vadd.f32 %v555, %v583
    %585 = vdwg.mxu0
    %s586 = scalar_lea.vmem %s3, 64
    %v587 = vld [vmem:[%s586] sm:$0xff]
    %v588 = vld [vmem:[%s586 + $0x8] sm:$0xff]
    %v589 = vld [vmem:[%s586 + $0x10] sm:$0xff]
    %v590 = vld [vmem:[%s586 + $0x18] sm:$0xff]
    %s591 = scalar_lea.vmem %s4, 2
    %v592 = vld [vmem:[%s591] sm:$0x1]
    %v594 = vperm.slane %v592, 0
    %596 = vmatpush.msra.mxu0 0.0
    %597 = vmatpush.msra.mxu0 0.0
    %598 = vmatpush.msra.mxu0 0.0
    %599 = vmatpush.msra.mxu0 0.0
    %600 = vmatpush.msra.mxu0 0.0
    %601 = vmatpush.msra.mxu0 0.0
    %602 = vmatpush.msra.mxu0 0.0
    %603 = vmatpush.msra.mxu0 0.0
    %604 = vmatpush.msra.mxu0 0.0
    %605 = vmatpush.msra.mxu0 0.0
    %606 = vmatpush.msra.mxu0 0.0
    %607 = vmatpush.msra.mxu0 0.0
    %608 = vmatpush.msra.mxu0 %v590
    %609 = vmatpush.msra.mxu0 %v589
    %610 = vmatpush.msra.mxu0 %v588
    %611 = vmatpush.msra.mxu0 %v587
    %612 = vmatmul.f32.gmra.mxu0 %v67
    %v613 = vpop.f32.mrf.mxu0
    %v614 = vadd.f32 %v594, %v613
    %615 = vmatmul.f32.gmra.mxu0 %v70
    %v616 = vpop.f32.mrf.mxu0
    %v617 = vadd.f32 %v594, %v616
    %618 = vdwg.mxu0
    %s619 = scalar_lea.vmem %s3, 192
    %v620 = vld [vmem:[%s619] sm:$0xff]
    %v621 = vld [vmem:[%s619 + $0x8] sm:$0xff]
    %v622 = vld [vmem:[%s619 + $0x10] sm:$0xff]
    %v623 = vld [vmem:[%s619 + $0x18] sm:$0xff]
    %s624 = scalar_lea.vmem %s4, 6
    %v625 = vld [vmem:[%s624] sm:$0x1]
    %v627 = vperm.slane %v625, 0
    %629 = vmatpush.msra.mxu0 0.0
    %630 = vmatpush.msra.mxu0 0.0
    %631 = vmatpush.msra.mxu0 0.0
    %632 = vmatpush.msra.mxu0 0.0
    %633 = vmatpush.msra.mxu0 0.0
    %634 = vmatpush.msra.mxu0 0.0
    %635 = vmatpush.msra.mxu0 0.0
    %636 = vmatpush.msra.mxu0 0.0
    %637 = vmatpush.msra.mxu0 0.0
    %638 = vmatpush.msra.mxu0 0.0
    %639 = vmatpush.msra.mxu0 0.0
    %640 = vmatpush.msra.mxu0 0.0
    %641 = vmatpush.msra.mxu0 %v623
    %642 = vmatpush.msra.mxu0 %v622
    %643 = vmatpush.msra.mxu0 %v621
    %644 = vmatpush.msra.mxu0 %v620
    %645 = vmatmul.f32.gmra.mxu0 %v106
    %v646 = vpop.f32.mrf.mxu0
    %v647 = vadd.f32 %v627, %v646
    %648 = vmatmul.f32.gmra.mxu0 %v109
    %v649 = vpop.f32.mrf.mxu0
    %v650 = vadd.f32 %v627, %v649
    %651 = vdwg.mxu0
    %s652 = scalar_lea.vmem %s3, 320
    %v653 = vld [vmem:[%s652] sm:$0xff]
    %v654 = vld [vmem:[%s652 + $0x8] sm:$0xff]
    %v655 = vld [vmem:[%s652 + $0x10] sm:$0xff]
    %v656 = vld [vmem:[%s652 + $0x18] sm:$0xff]
    %s657 = scalar_lea.vmem %s4, 10
    %v658 = vld [vmem:[%s657] sm:$0x1]
    %v660 = vperm.slane %v658, 0
    %662 = vmatpush.msra.mxu0 0.0
    %663 = vmatpush.msra.mxu0 0.0
    %664 = vmatpush.msra.mxu0 0.0
    %665 = vmatpush.msra.mxu0 0.0
    %666 = vmatpush.msra.mxu0 0.0
    %667 = vmatpush.msra.mxu0 0.0
    %668 = vmatpush.msra.mxu0 0.0
    %669 = vmatpush.msra.mxu0 0.0
    %670 = vmatpush.msra.mxu0 0.0
    %671 = vmatpush.msra.mxu0 0.0
    %672 = vmatpush.msra.mxu0 0.0
    %673 = vmatpush.msra.mxu0 0.0
    %674 = vmatpush.msra.mxu0 %v656
    %675 = vmatpush.msra.mxu0 %v655
    %676 = vmatpush.msra.mxu0 %v654
    %677 = vmatpush.msra.mxu0 %v653
    %678 = vmatmul.f32.gmra.mxu0 %v145
    %v679 = vpop.f32.mrf.mxu0
    %v680 = vadd.f32 %v660, %v679
    %681 = vmatmul.f32.gmra.mxu0 %v148
    %v682 = vpop.f32.mrf.mxu0
    %v683 = vadd.f32 %v660, %v682
    %684 = vdwg.mxu0
    %v686 = vsel %vm173, %v614, 0
    %v689 = vsel %vm173, %v647, 0
    %691 = vmatpush.xpose.msra.mxu0 0.0
    %692 = vmatpush.xpose.msra.mxu0 0.0
    %693 = vmatpush.xpose.msra.mxu0 0.0
    %694 = vmatpush.xpose.msra.mxu0 0.0
    %695 = vmatpush.xpose.msra.mxu0 0.0
    %696 = vmatpush.xpose.msra.mxu0 0.0
    %697 = vmatpush.xpose.msra.mxu0 0.0
    %698 = vmatpush.xpose.msra.mxu0 0.0
    %699 = vmatpush.xpose.msra.mxu0 0.0
    %700 = vmatpush.xpose.msra.mxu0 0.0
    %701 = vmatpush.xpose.msra.mxu0 0.0
    %702 = vmatpush.xpose.msra.mxu0 0.0
    %703 = vmatpush.xpose.msra.mxu0 0.0
    %704 = vmatpush.xpose.msra.mxu0 0.0
    %705 = vmatpush.xpose.msra.mxu0 0.0
    %706 = vmatpush.xpose.msra.mxu0 %v689
    %707 = vmatmul.f32.gmra.mxu0 %v686
    %v708 = vpop.f32.mrf.mxu0
    %v709 = vadd.f32 0.0, %v708
    %710 = vdwg.mxu0
    %v712 = vsel %vm173, %v617, 0
    %v715 = vsel %vm173, %v650, 0
    %717 = vmatpush.xpose.msra.mxu0 0.0
    %718 = vmatpush.xpose.msra.mxu0 0.0
    %719 = vmatpush.xpose.msra.mxu0 0.0
    %720 = vmatpush.xpose.msra.mxu0 0.0
    %721 = vmatpush.xpose.msra.mxu0 0.0
    %722 = vmatpush.xpose.msra.mxu0 0.0
    %723 = vmatpush.xpose.msra.mxu0 0.0
    %724 = vmatpush.xpose.msra.mxu0 0.0
    %725 = vmatpush.xpose.msra.mxu0 0.0
    %726 = vmatpush.xpose.msra.mxu0 0.0
    %727 = vmatpush.xpose.msra.mxu0 0.0
    %728 = vmatpush.xpose.msra.mxu0 0.0
    %729 = vmatpush.xpose.msra.mxu0 0.0
    %730 = vmatpush.xpose.msra.mxu0 0.0
    %731 = vmatpush.xpose.msra.mxu0 0.0
    %732 = vmatpush.xpose.msra.mxu0 %v715
    %733 = vmatmul.f32.gmra.mxu0 %v712
    %v734 = vpop.f32.mrf.mxu0
    %v735 = vadd.f32 0.0, %v734
    %736 = vdwg.mxu0
    %v737 = vsel %vm173, %v709, -inf
    %738 = vmax.xlane.f32.xlu0 %v737
    %v739 = vpop.xlane.xlu0 %738
    %v740 = vsel %vm173, %v735, -inf
    %741 = vmax.xlane.f32.xlu0 %v740
    %v742 = vpop.xlane.xlu0 %741
    %v743 = vsub.f32 %v709, %v739
    %v744 = vsub.f32 %v735, %v742
    %v745 = vmul.f32 %v743, 1.442695
    %v746 = vpow.pop %v745
    %v747 = vmul.f32 %v744, 1.442695
    %v748 = vpow.pop %v747
    %v749 = vsel %vm173, %v746, 0.0
    %750 = vadd.xlane.f32.xlu0 %v749
    %v751 = vpop.xlane.xlu0 %750
    %v752 = vsel %vm173, %v748, 0.0
    %753 = vadd.xlane.f32.xlu0 %v752
    %v754 = vpop.xlane.xlu0 %753
    %v755 = vrcp.pop %v751
    %v756 = vrcp.pop %v754
    %v757 = vmul.f32 %v751, %v755
    %v758 = vmul.f32 %v754, %v756
    %v759 = vsub.f32 2.0, %v757
    %v760 = vsub.f32 2.0, %v758
    %v761 = vmul.f32 %v755, %v759
    %v762 = vmul.f32 %v756, %v760
    %v763 = vmul.f32 %v746, %v761
    %v764 = vmul.f32 %v748, %v762
    %v766 = vsel %vm173, %v763, 0
    %768 = vmatpush.msra.mxu0 0.0
    %769 = vmatpush.msra.mxu0 0.0
    %770 = vmatpush.msra.mxu0 0.0
    %771 = vmatpush.msra.mxu0 0.0
    %772 = vmatpush.msra.mxu0 0.0
    %773 = vmatpush.msra.mxu0 0.0
    %774 = vmatpush.msra.mxu0 0.0
    %775 = vmatpush.msra.mxu0 0.0
    %776 = vmatpush.msra.mxu0 0.0
    %777 = vmatpush.msra.mxu0 0.0
    %778 = vmatpush.msra.mxu0 0.0
    %779 = vmatpush.msra.mxu0 0.0
    %780 = vmatpush.msra.mxu0 0.0
    %781 = vmatpush.msra.mxu0 0.0
    %782 = vmatpush.msra.mxu0 0.0
    %783 = vmatpush.msra.mxu0 %v680
    %784 = vmatmul.f32.gmra.mxu0 %v766
    %v785 = vpop.f32.mrf.mxu0
    %v786 = vadd.f32 0.0, %v785
    %787 = vdwg.mxu0
    %v789 = vsel %vm173, %v764, 0
    %791 = vmatpush.msra.mxu0 0.0
    %792 = vmatpush.msra.mxu0 0.0
    %793 = vmatpush.msra.mxu0 0.0
    %794 = vmatpush.msra.mxu0 0.0
    %795 = vmatpush.msra.mxu0 0.0
    %796 = vmatpush.msra.mxu0 0.0
    %797 = vmatpush.msra.mxu0 0.0
    %798 = vmatpush.msra.mxu0 0.0
    %799 = vmatpush.msra.mxu0 0.0
    %800 = vmatpush.msra.mxu0 0.0
    %801 = vmatpush.msra.mxu0 0.0
    %802 = vmatpush.msra.mxu0 0.0
    %803 = vmatpush.msra.mxu0 0.0
    %804 = vmatpush.msra.mxu0 0.0
    %805 = vmatpush.msra.mxu0 0.0
    %806 = vmatpush.msra.mxu0 %v683
    %807 = vmatmul.f32.gmra.mxu0 %v789
    %v808 = vpop.f32.mrf.mxu0
    %v809 = vadd.f32 0.0, %v808
    %810 = vdwg.mxu0
    %s811 = scalar_lea.vmem %s5, 16
    %v812 = vld [vmem:[%s811] sm:$0xff]
    %v814 = vsel %vm173, %v786, 0
    %v817 = vsel %vm173, %v809, 0
    %819 = vmatpush.msra.mxu0 0.0
    %820 = vmatpush.msra.mxu0 0.0
    %821 = vmatpush.msra.mxu0 0.0
    %822 = vmatpush.msra.mxu0 0.0
    %823 = vmatpush.msra.mxu0 0.0
    %824 = vmatpush.msra.mxu0 0.0
    %825 = vmatpush.msra.mxu0 0.0
    %826 = vmatpush.msra.mxu0 0.0
    %827 = vmatpush.msra.mxu0 0.0
    %828 = vmatpush.msra.mxu0 0.0
    %829 = vmatpush.msra.mxu0 0.0
    %830 = vmatpush.msra.mxu0 0.0
    %831 = vmatpush.msra.mxu0 0.0
    %832 = vmatpush.msra.mxu0 0.0
    %833 = vmatpush.msra.mxu0 0.0
    %834 = vmatpush.msra.mxu0 %v812
    %835 = vmatmul.f32.gmra.mxu0 %v814
    %v836 = vpop.f32.mrf.mxu0
    %v837 = vadd.f32 0.0, %v836
    %838 = vmatmul.f32.gmra.mxu0 %v817
    %v839 = vpop.f32.mrf.mxu0
    %v840 = vadd.f32 0.0, %v839
    %841 = vdwg.mxu0
    %v842 = vadd.f32 %v581, %v837
    %v843 = vadd.f32 %v584, %v840
    %s844 = scalar_lea.vmem %s3, 96
    %v845 = vld [vmem:[%s844] sm:$0xff]
    %v846 = vld [vmem:[%s844 + $0x8] sm:$0xff]
    %v847 = vld [vmem:[%s844 + $0x10] sm:$0xff]
    %v848 = vld [vmem:[%s844 + $0x18] sm:$0xff]
    %s849 = scalar_lea.vmem %s4, 3
    %v850 = vld [vmem:[%s849] sm:$0x1]
    %v852 = vperm.slane %v850, 0
    %854 = vmatpush.msra.mxu0 0.0
    %855 = vmatpush.msra.mxu0 0.0
    %856 = vmatpush.msra.mxu0 0.0
    %857 = vmatpush.msra.mxu0 0.0
    %858 = vmatpush.msra.mxu0 0.0
    %859 = vmatpush.msra.mxu0 0.0
    %860 = vmatpush.msra.mxu0 0.0
    %861 = vmatpush.msra.mxu0 0.0
    %862 = vmatpush.msra.mxu0 0.0
    %863 = vmatpush.msra.mxu0 0.0
    %864 = vmatpush.msra.mxu0 0.0
    %865 = vmatpush.msra.mxu0 0.0
    %866 = vmatpush.msra.mxu0 %v848
    %867 = vmatpush.msra.mxu0 %v847
    %868 = vmatpush.msra.mxu0 %v846
    %869 = vmatpush.msra.mxu0 %v845
    %870 = vmatmul.f32.gmra.mxu0 %v67
    %v871 = vpop.f32.mrf.mxu0
    %v872 = vadd.f32 %v852, %v871
    %873 = vmatmul.f32.gmra.mxu0 %v70
    %v874 = vpop.f32.mrf.mxu0
    %v875 = vadd.f32 %v852, %v874
    %876 = vdwg.mxu0
    %s877 = scalar_lea.vmem %s3, 224
    %v878 = vld [vmem:[%s877] sm:$0xff]
    %v879 = vld [vmem:[%s877 + $0x8] sm:$0xff]
    %v880 = vld [vmem:[%s877 + $0x10] sm:$0xff]
    %v881 = vld [vmem:[%s877 + $0x18] sm:$0xff]
    %s882 = scalar_lea.vmem %s4, 7
    %v883 = vld [vmem:[%s882] sm:$0x1]
    %v885 = vperm.slane %v883, 0
    %887 = vmatpush.msra.mxu0 0.0
    %888 = vmatpush.msra.mxu0 0.0
    %889 = vmatpush.msra.mxu0 0.0
    %890 = vmatpush.msra.mxu0 0.0
    %891 = vmatpush.msra.mxu0 0.0
    %892 = vmatpush.msra.mxu0 0.0
    %893 = vmatpush.msra.mxu0 0.0
    %894 = vmatpush.msra.mxu0 0.0
    %895 = vmatpush.msra.mxu0 0.0
    %896 = vmatpush.msra.mxu0 0.0
    %897 = vmatpush.msra.mxu0 0.0
    %898 = vmatpush.msra.mxu0 0.0
    %899 = vmatpush.msra.mxu0 %v881
    %900 = vmatpush.msra.mxu0 %v880
    %901 = vmatpush.msra.mxu0 %v879
    %902 = vmatpush.msra.mxu0 %v878
    %903 = vmatmul.f32.gmra.mxu0 %v106
    %v904 = vpop.f32.mrf.mxu0
    %v905 = vadd.f32 %v885, %v904
    %906 = vmatmul.f32.gmra.mxu0 %v109
    %v907 = vpop.f32.mrf.mxu0
    %v908 = vadd.f32 %v885, %v907
    %909 = vdwg.mxu0
    %s910 = scalar_lea.vmem %s3, 352
    %v911 = vld [vmem:[%s910] sm:$0xff]
    %v912 = vld [vmem:[%s910 + $0x8] sm:$0xff]
    %v913 = vld [vmem:[%s910 + $0x10] sm:$0xff]
    %v914 = vld [vmem:[%s910 + $0x18] sm:$0xff]
    %s915 = scalar_lea.vmem %s4, 11
    %v916 = vld [vmem:[%s915] sm:$0x1]
    %v918 = vperm.slane %v916, 0
    %920 = vmatpush.msra.mxu0 0.0
    %921 = vmatpush.msra.mxu0 0.0
    %922 = vmatpush.msra.mxu0 0.0
    %923 = vmatpush.msra.mxu0 0.0
    %924 = vmatpush.msra.mxu0 0.0
    %925 = vmatpush.msra.mxu0 0.0
    %926 = vmatpush.msra.mxu0 0.0
    %927 = vmatpush.msra.mxu0 0.0
    %928 = vmatpush.msra.mxu0 0.0
    %929 = vmatpush.msra.mxu0 0.0
    %930 = vmatpush.msra.mxu0 0.0
    %931 = vmatpush.msra.mxu0 0.0
    %932 = vmatpush.msra.mxu0 %v914
    %933 = vmatpush.msra.mxu0 %v913
    %934 = vmatpush.msra.mxu0 %v912
    %935 = vmatpush.msra.mxu0 %v911
    %936 = vmatmul.f32.gmra.mxu0 %v145
    %v937 = vpop.f32.mrf.mxu0
    %v938 = vadd.f32 %v918, %v937
    %939 = vmatmul.f32.gmra.mxu0 %v148
    %v940 = vpop.f32.mrf.mxu0
    %v941 = vadd.f32 %v918, %v940
    %942 = vdwg.mxu0
    %v944 = vsel %vm173, %v872, 0
    %v947 = vsel %vm173, %v905, 0
    %949 = vmatpush.xpose.msra.mxu0 0.0
    %950 = vmatpush.xpose.msra.mxu0 0.0
    %951 = vmatpush.xpose.msra.mxu0 0.0
    %952 = vmatpush.xpose.msra.mxu0 0.0
    %953 = vmatpush.xpose.msra.mxu0 0.0
    %954 = vmatpush.xpose.msra.mxu0 0.0
    %955 = vmatpush.xpose.msra.mxu0 0.0
    %956 = vmatpush.xpose.msra.mxu0 0.0
    %957 = vmatpush.xpose.msra.mxu0 0.0
    %958 = vmatpush.xpose.msra.mxu0 0.0
    %959 = vmatpush.xpose.msra.mxu0 0.0
    %960 = vmatpush.xpose.msra.mxu0 0.0
    %961 = vmatpush.xpose.msra.mxu0 0.0
    %962 = vmatpush.xpose.msra.mxu0 0.0
    %963 = vmatpush.xpose.msra.mxu0 0.0
    %964 = vmatpush.xpose.msra.mxu0 %v947
    %965 = vmatmul.f32.gmra.mxu0 %v944
    %v966 = vpop.f32.mrf.mxu0
    %v967 = vadd.f32 0.0, %v966
    %968 = vdwg.mxu0
    %v970 = vsel %vm173, %v875, 0
    %v973 = vsel %vm173, %v908, 0
    %975 = vmatpush.xpose.msra.mxu0 0.0
    %976 = vmatpush.xpose.msra.mxu0 0.0
    %977 = vmatpush.xpose.msra.mxu0 0.0
    %978 = vmatpush.xpose.msra.mxu0 0.0
    %979 = vmatpush.xpose.msra.mxu0 0.0
    %980 = vmatpush.xpose.msra.mxu0 0.0
    %981 = vmatpush.xpose.msra.mxu0 0.0
    %982 = vmatpush.xpose.msra.mxu0 0.0
    %983 = vmatpush.xpose.msra.mxu0 0.0
    %984 = vmatpush.xpose.msra.mxu0 0.0
    %985 = vmatpush.xpose.msra.mxu0 0.0
    %986 = vmatpush.xpose.msra.mxu0 0.0
    %987 = vmatpush.xpose.msra.mxu0 0.0
    %988 = vmatpush.xpose.msra.mxu0 0.0
    %989 = vmatpush.xpose.msra.mxu0 0.0
    %990 = vmatpush.xpose.msra.mxu0 %v973
    %991 = vmatmul.f32.gmra.mxu0 %v970
    %v992 = vpop.f32.mrf.mxu0
    %v993 = vadd.f32 0.0, %v992
    %994 = vdwg.mxu0
    %v995 = vsel %vm173, %v967, -inf
    %996 = vmax.xlane.f32.xlu0 %v995
    %v997 = vpop.xlane.xlu0 %996
    %v998 = vsel %vm173, %v993, -inf
    %999 = vmax.xlane.f32.xlu0 %v998
    %v1000 = vpop.xlane.xlu0 %999
    %v1001 = vsub.f32 %v967, %v997
    %v1002 = vsub.f32 %v993, %v1000
    %v1003 = vmul.f32 %v1001, 1.442695
    %v1004 = vpow.pop %v1003
    %v1005 = vmul.f32 %v1002, 1.442695
    %v1006 = vpow.pop %v1005
    %v1007 = vsel %vm173, %v1004, 0.0
    %1008 = vadd.xlane.f32.xlu0 %v1007
    %v1009 = vpop.xlane.xlu0 %1008
    %v1010 = vsel %vm173, %v1006, 0.0
    %1011 = vadd.xlane.f32.xlu0 %v1010
    %v1012 = vpop.xlane.xlu0 %1011
    %v1013 = vrcp.pop %v1009
    %v1014 = vrcp.pop %v1012
    %v1015 = vmul.f32 %v1009, %v1013
    %v1016 = vmul.f32 %v1012, %v1014
    %v1017 = vsub.f32 2.0, %v1015
    %v1018 = vsub.f32 2.0, %v1016
    %v1019 = vmul.f32 %v1013, %v1017
    %v1020 = vmul.f32 %v1014, %v1018
    %v1021 = vmul.f32 %v1004, %v1019
    %v1022 = vmul.f32 %v1006, %v1020
    %v1024 = vsel %vm173, %v1021, 0
    %1026 = vmatpush.msra.mxu0 0.0
    %1027 = vmatpush.msra.mxu0 0.0
    %1028 = vmatpush.msra.mxu0 0.0
    %1029 = vmatpush.msra.mxu0 0.0
    %1030 = vmatpush.msra.mxu0 0.0
    %1031 = vmatpush.msra.mxu0 0.0
    %1032 = vmatpush.msra.mxu0 0.0
    %1033 = vmatpush.msra.mxu0 0.0
    %1034 = vmatpush.msra.mxu0 0.0
    %1035 = vmatpush.msra.mxu0 0.0
    %1036 = vmatpush.msra.mxu0 0.0
    %1037 = vmatpush.msra.mxu0 0.0
    %1038 = vmatpush.msra.mxu0 0.0
    %1039 = vmatpush.msra.mxu0 0.0
    %1040 = vmatpush.msra.mxu0 0.0
    %1041 = vmatpush.msra.mxu0 %v938
    %1042 = vmatmul.f32.gmra.mxu0 %v1024
    %v1043 = vpop.f32.mrf.mxu0
    %v1044 = vadd.f32 0.0, %v1043
    %1045 = vdwg.mxu0
    %v1047 = vsel %vm173, %v1022, 0
    %1049 = vmatpush.msra.mxu0 0.0
    %1050 = vmatpush.msra.mxu0 0.0
    %1051 = vmatpush.msra.mxu0 0.0
    %1052 = vmatpush.msra.mxu0 0.0
    %1053 = vmatpush.msra.mxu0 0.0
    %1054 = vmatpush.msra.mxu0 0.0
    %1055 = vmatpush.msra.mxu0 0.0
    %1056 = vmatpush.msra.mxu0 0.0
    %1057 = vmatpush.msra.mxu0 0.0
    %1058 = vmatpush.msra.mxu0 0.0
    %1059 = vmatpush.msra.mxu0 0.0
    %1060 = vmatpush.msra.mxu0 0.0
    %1061 = vmatpush.msra.mxu0 0.0
    %1062 = vmatpush.msra.mxu0 0.0
    %1063 = vmatpush.msra.mxu0 0.0
    %1064 = vmatpush.msra.mxu0 %v941
    %1065 = vmatmul.f32.gmra.mxu0 %v1047
    %v1066 = vpop.f32.mrf.mxu0
    %v1067 = vadd.f32 0.0, %v1066
    %1068 = vdwg.mxu0
    %s1069 = scalar_lea.vmem %s5, 24
    %v1070 = vld [vmem:[%s1069] sm:$0xff]
    %v1072 = vsel %vm173, %v1044, 0
    %v1075 = vsel %vm173, %v1067, 0
    %1077 = vmatpush.msra.mxu0 0.0
    %1078 = vmatpush.msra.mxu0 0.0
    %1079 = vmatpush.msra.mxu0 0.0
    %1080 = vmatpush.msra.mxu0 0.0
    %1081 = vmatpush.msra.mxu0 0.0
    %1082 = vmatpush.msra.mxu0 0.0
    %1083 = vmatpush.msra.mxu0 0.0
    %1084 = vmatpush.msra.mxu0 0.0
    %1085 = vmatpush.msra.mxu0 0.0
    %1086 = vmatpush.msra.mxu0 0.0
    %1087 = vmatpush.msra.mxu0 0.0
    %1088 = vmatpush.msra.mxu0 0.0
    %1089 = vmatpush.msra.mxu0 0.0
    %1090 = vmatpush.msra.mxu0 0.0
    %1091 = vmatpush.msra.mxu0 0.0
    %1092 = vmatpush.msra.mxu0 %v1070
    %1093 = vmatmul.f32.gmra.mxu0 %v1072
    %v1094 = vpop.f32.mrf.mxu0
    %v1095 = vadd.f32 0.0, %v1094
    %1096 = vmatmul.f32.gmra.mxu0 %v1075
    %v1097 = vpop.f32.mrf.mxu0
    %v1098 = vadd.f32 0.0, %v1097
    %1099 = vdwg.mxu0
    %v1100 = vadd.f32 %v842, %v1095
    %v1101 = vadd.f32 %v843, %v1098
    %v1102 = vld [vmem:[%s6] sm:$0x1]
    %v1104 = vperm.slane %v1102, 0
    %v1106 = vadd.f32 %v1100, %v1104
    %v1107 = vadd.f32 %v1101, %v1104
    %v1108 = vadd.f32 %v1106, %v51
    %v1109 = vadd.f32 %v1107, %v52
    %v1110 = vld [vmem:[%s7] sm:$0x1]
    %v1111 = vld [vmem:[%s8] sm:$0x1]
    %v1112 = vsel %vm65, %v1108, 0.0
    %1113 = vadd.xlane.f32.xlu0 %v1112
    %v1114 = vpop.xlane.xlu0 %1113
    %v1115 = vsel %vm65, %v1109, 0.0
    %1116 = vadd.xlane.f32.xlu0 %v1115
    %v1117 = vpop.xlane.xlu0 %1116
    %v1118 = vrcp.pop 32.0
    %v1119 = vmul.f32 32.0, %v1118
    %v1120 = vsub.f32 1.0, %v1119
    %v1121 = vmul.f32 %v1118, %v1120
    %v1122 = vadd.f32 %v1118, %v1121
    %vm1123 = vweird.f32 %v1118
    %v1124 = vsel %vm1123, %v1118, %v1122
    %v1125 = vmul.f32 %v1114, %v1124
    %v1126 = vmul.f32 %v1117, %v1124
    %v1127 = vsub.f32 %v1108, %v1125
    %v1128 = vsub.f32 %v1109, %v1126
    %v1129 = vmul.f32 %v1127, %v1127
    %v1130 = vmul.f32 %v1128, %v1128
    %v1131 = vsel %vm65, %v1129, 0.0
    %1132 = vadd.xlane.f32.xlu0 %v1131
    %v1133 = vpop.xlane.xlu0 %1132
    %v1134 = vsel %vm65, %v1130, 0.0
    %1135 = vadd.xlane.f32.xlu0 %v1134
    %v1136 = vpop.xlane.xlu0 %1135
    %v1137 = vmul.f32 %v1133, %v1124
    %v1138 = vmul.f32 %v1136, %v1124
    %v1139 = vadd.f32 %v1137, 1e-05
    %v1140 = vadd.f32 %v1138, 1e-05
    %v1141 = vrsqrt.pop %v1139
    %v1142 = vmul.f32 %v1141, %v1139
    %v1143 = vmul.f32 %v1142, %v1141
    %v1144 = vmul.f32 0.5, %v1143
    %v1145 = vsub.f32 1.5, %v1144
    %v1146 = vmul.f32 %v1141, %v1145
    %vm1147 = vweird.f32 %v1139
    %vm1148 = vweird.f32 %v1141
    %vm1149 = vmor %vm1147, %vm1148
    %v1150 = vsel %vm1149, %v1141, %v1146
    %v1151 = vrsqrt.pop %v1140
    %v1152 = vmul.f32 %v1151, %v1140
    %v1153 = vmul.f32 %v1152, %v1151
    %v1154 = vmul.f32 0.5, %v1153
    %v1155 = vsub.f32 1.5, %v1154
    %v1156 = vmul.f32 %v1151, %v1155
    %vm1157 = vweird.f32 %v1140
    %vm1158 = vweird.f32 %v1151
    %vm1159 = vmor %vm1157, %vm1158
    %v1160 = vsel %vm1159, %v1151, %v1156
    %v1161 = vmul.f32 %v1127, %v1150
    %v1162 = vmul.f32 %v1128, %v1160
    %v1164 = vperm.slane %v1110, 0
    %v1166 = vmul.f32 %v1161, %v1164
    %v1167 = vmul.f32 %v1162, %v1164
    %v1169 = vperm.slane %v1111, 0
    %v1171 = vadd.f32 %v1166, %v1169
    %v1172 = vadd.f32 %v1167, %v1169
    %v1173 = vld [vmem:[%s9] sm:$0xff]
    %v1174 = vld [vmem:[%s9 + $0x8] sm:$0xff]
    %v1175 = vld [vmem:[%s9 + $0x10] sm:$0xff]
    %v1176 = vld [vmem:[%s9 + $0x18] sm:$0xff]
    %v1177 = vld [vmem:[%s10] sm:$0x1]
    %v1179 = vperm.slane %v1177, 0
    %v1182 = vsel %vm65, %v1171, 0
    %v1185 = vsel %vm65, %v1172, 0
    %1187 = vmatpush.msra.mxu0 0.0
    %1188 = vmatpush.msra.mxu0 0.0
    %1189 = vmatpush.msra.mxu0 0.0
    %1190 = vmatpush.msra.mxu0 0.0
    %1191 = vmatpush.msra.mxu0 0.0
    %1192 = vmatpush.msra.mxu0 0.0
    %1193 = vmatpush.msra.mxu0 0.0
    %1194 = vmatpush.msra.mxu0 0.0
    %1195 = vmatpush.msra.mxu0 0.0
    %1196 = vmatpush.msra.mxu0 0.0
    %1197 = vmatpush.msra.mxu0 0.0
    %1198 = vmatpush.msra.mxu0 0.0
    %1199 = vmatpush.msra.mxu0 %v1176
    %1200 = vmatpush.msra.mxu0 %v1175
    %1201 = vmatpush.msra.mxu0 %v1174
    %1202 = vmatpush.msra.mxu0 %v1173
    %1203 = vmatmul.f32.gmra.mxu0 %v1182
    %v1204 = vpop.f32.mrf.mxu0
    %v1205 = vadd.f32 %v1179, %v1204
    %1206 = vmatmul.f32.gmra.mxu0 %v1185
    %v1207 = vpop.f32.mrf.mxu0
    %v1208 = vadd.f32 %v1179, %v1207
    %1209 = vdwg.mxu0
    %v1210 = vmax.f32 %v1205, 0.0
    %v1211 = vmax.f32 %v1208, 0.0
    %v1212 = vld [vmem:[%s11] sm:$0xff]
    %v1213 = vld [vmem:[%s11 + $0x8] sm:$0xff]
    %v1214 = vld [vmem:[%s11 + $0x10] sm:$0xff]
    %v1215 = vld [vmem:[%s11 + $0x18] sm:$0xff]
    %v1216 = vld [vmem:[%s11 + $0x20] sm:$0xff]
    %v1217 = vld [vmem:[%s11 + $0x28] sm:$0xff]
    %v1218 = vld [vmem:[%s11 + $0x30] sm:$0xff]
    %v1219 = vld [vmem:[%s11 + $0x38] sm:$0xff]
    %v1220 = vld [vmem:[%s11 + $0x40] sm:$0xff]
    %v1221 = vld [vmem:[%s11 + $0x48] sm:$0xff]
    %v1222 = vld [vmem:[%s11 + $0x50] sm:$0xff]
    %v1223 = vld [vmem:[%s11 + $0x58] sm:$0xff]
    %v1224 = vld [vmem:[%s11 + $0x60] sm:$0xff]
    %v1225 = vld [vmem:[%s11 + $0x68] sm:$0xff]
    %v1226 = vld [vmem:[%s11 + $0x70] sm:$0xff]
    %v1227 = vld [vmem:[%s11 + $0x78] sm:$0xff]
    %v1228 = vld [vmem:[%s12] sm:$0x1]
    %v1230 = vperm.slane %v1228, 0
    %1232 = vmatpush.msra.mxu0 %v1227
    %1233 = vmatpush.msra.mxu0 %v1226
    %1234 = vmatpush.msra.mxu0 %v1225
    %1235 = vmatpush.msra.mxu0 %v1224
    %1236 = vmatpush.msra.mxu0 %v1223
    %1237 = vmatpush.msra.mxu0 %v1222
    %1238 = vmatpush.msra.mxu0 %v1221
    %1239 = vmatpush.msra.mxu0 %v1220
    %1240 = vmatpush.msra.mxu0 %v1219
    %1241 = vmatpush.msra.mxu0 %v1218
    %1242 = vmatpush.msra.mxu0 %v1217
    %1243 = vmatpush.msra.mxu0 %v1216
    %1244 = vmatpush.msra.mxu0 %v1215
    %1245 = vmatpush.msra.mxu0 %v1214
    %1246 = vmatpush.msra.mxu0 %v1213
    %1247 = vmatpush.msra.mxu0 %v1212
    %1248 = vmatmul.f32.gmra.mxu0 %v1210
    %v1249 = vpop.f32.mrf.mxu0
    %v1250 = vadd.f32 %v1230, %v1249
    %1251 = vmatmul.f32.gmra.mxu0 %v1211
    %v1252 = vpop.f32.mrf.mxu0
    %v1253 = vadd.f32 %v1230, %v1252
    %1254 = vdwg.mxu0
    %v1255 = vadd.f32 %v1250, %v1171
    %v1256 = vadd.f32 %v1253, %v1172
    %v1257 = vld [vmem:[%s13] sm:$0x1]
    %v1258 = vld [vmem:[%s14] sm:$0x1]
    %v1259 = vsel %vm65, %v1255, 0.0
    %1260 = vadd.xlane.f32.xlu0 %v1259
    %v1261 = vpop.xlane.xlu0 %1260
    %v1262 = vsel %vm65, %v1256, 0.0
    %1263 = vadd.xlane.f32.xlu0 %v1262
    %v1264 = vpop.xlane.xlu0 %1263
    %v1265 = vmul.f32 %v1261, %v1124
    %v1266 = vmul.f32 %v1264, %v1124
    %v1267 = vsub.f32 %v1255, %v1265
    %v1268 = vsub.f32 %v1256, %v1266
    %v1269 = vmul.f32 %v1267, %v1267
    %v1270 = vmul.f32 %v1268, %v1268
    %v1271 = vsel %vm65, %v1269, 0.0
    %1272 = vadd.xlane.f32.xlu0 %v1271
    %v1273 = vpop.xlane.xlu0 %1272
    %v1274 = vsel %vm65, %v1270, 0.0
    %1275 = vadd.xlane.f32.xlu0 %v1274
    %v1276 = vpop.xlane.xlu0 %1275
    %v1277 = vmul.f32 %v1273, %v1124
    %v1278 = vmul.f32 %v1276, %v1124
    %v1279 = vadd.f32 %v1277, 1e-05
    %v1280 = vadd.f32 %v1278, 1e-05
    %v1281 = vrsqrt.pop %v1279
    %v1282 = vmul.f32 %v1281, %v1279
    %v1283 = vmul.f32 %v1282, %v1281
    %v1284 = vmul.f32 0.5, %v1283
    %v1285 = vsub.f32 1.5, %v1284
    %v1286 = vmul.f32 %v1281, %v1285
    %vm1287 = vweird.f32 %v1279
    %vm1288 = vweird.f32 %v1281
    %vm1289 = vmor %vm1287, %vm1288
    %v1290 = vsel %vm1289, %v1281, %v1286
    %v1291 = vrsqrt.pop %v1280
    %v1292 = vmul.f32 %v1291, %v1280
    %v1293 = vmul.f32 %v1292, %v1291
    %v1294 = vmul.f32 0.5, %v1293
    %v1295 = vsub.f32 1.5, %v1294
    %v1296 = vmul.f32 %v1291, %v1295
    %vm1297 = vweird.f32 %v1280
    %vm1298 = vweird.f32 %v1291
    %vm1299 = vmor %vm1297, %vm1298
    %v1300 = vsel %vm1299, %v1291, %v1296
    %v1301 = vmul.f32 %v1267, %v1290
    %v1302 = vmul.f32 %v1268, %v1300
    %v1304 = vperm.slane %v1257, 0
    %v1306 = vmul.f32 %v1301, %v1304
    %v1307 = vmul.f32 %v1302, %v1304
    %v1309 = vperm.slane %v1258, 0
    %v1311 = vadd.f32 %v1306, %v1309
    %v1312 = vadd.f32 %v1307, %v1309
    %1313 = vst.msk [vmem:[#allocation2] sm:$0xff] %vm65, %v1311
    %1314 = vst.msk [vmem:[#allocation2 + $0x8] sm:$0xff] %vm65, %v1312
    // Predicated region
    $region62: #{tpu_custom_call.1} parent=1 // pred_check
      _
    $region63: #{tpu_custom_call.1} parent=1 // pred_check_branch
      %1316 = sbr.rel (0) target = $region65
    $region64: #{tpu_custom_call.1} parent=1 // pred_region
      %1318 = vsyncadd [#allocation3], 0
      %s1319 = sshll.u32 [#allocation2], 4
      %s1320 = int_to_ptr.vmem [resolvable:$true] %s1319
      %s1321 = sshll.u32 %s15, 4
      %s1322 = int_to_ptr.hbm [resolvable:$true] %s1321
      %1327 = dma.vmem_to_hbm [thread:$0]  %s1320, 256, %s1322, [#allocation3], 128, 128, 8
    $region65: #{tpu_custom_call.1} parent=1 // pred_fallthru
      _
    // Predicated region
    $region66: #{tpu_custom_call.1} parent=1 // pred_check
      _
    $region67: #{tpu_custom_call.1} parent=1 // pred_check_branch
      %1329 = sbr.rel (0) target = $region69
    $region68: #{tpu_custom_call.1} parent=1 // pred_region
      %1331 = dma.done [#allocation3], 256
    $region69: #{tpu_custom_call.1} parent=1 // pred_fallthru
      _
    %1332 = vsyncpa [#allocation3], 1

</llo_original>
